<compile_context>
chip_gen: v6e
topology: v6e:2x2x1
jax: 0.10.0
libtpu: 0.0.40
codegen_flags: <defaults>
</compile_context>

<pallas_src>
import functools

import jax
import jax.numpy as jnp
import numpy as np
from jax import lax
from jax.experimental import pallas as pl
from jax.experimental.pallas import tpu as pltpu


def _round_up(x, m):
    return ((x + m - 1) // m) * m


# ----------------------------------------------------------------------------
# One-time parameter repacking (call once per weight set, not per forward).
# PyTorch nn.GRU layout: weight_ih_l0 (3H, 2F), weight_hh_l0 (3H, H),
# biases (3H,), gate order r, z, n.  Weights are transposed and split per gate
# so the kernel never has to slice gate columns out of a packed matmul result.
# b_hr and b_hz are folded into the (time-independent) input-projection bias;
# only the n-gate hidden bias b_hn must stay inside the recurrence
# (PyTorch: n = tanh(i_n + r * (W_hn h + b_hn))).
# ----------------------------------------------------------------------------
def pgru_pack_params(w_ih, w_hh, b_ih, b_hh):
    w_ih = jnp.asarray(w_ih, jnp.float32)
    w_hh = jnp.asarray(w_hh, jnp.float32)
    b_ih = jnp.asarray(b_ih, jnp.float32)
    b_hh = jnp.asarray(b_hh, jnp.float32)
    H = w_hh.shape[1]
    wih_t = jnp.stack([w_ih[g * H:(g + 1) * H, :].T for g in range(3)])  # (3, 2F, H)
    whh_t = jnp.stack([w_hh[g * H:(g + 1) * H, :].T for g in range(3)])  # (3, H, H)
    bi = jnp.stack([
        (b_ih[0 * H:1 * H] + b_hh[0 * H:1 * H])[None, :],   # r: fold b_hr in
        (b_ih[1 * H:2 * H] + b_hh[1 * H:2 * H])[None, :],   # z: fold b_hz in
        (b_ih[2 * H:3 * H])[None, :],                        # n: input bias only
    ])                                                        # (3, 1, H)
    bhn = b_hh[2 * H:3 * H][None, :]                          # (1, H)
    return {"wih_t": wih_t, "whh_t": whh_t, "bi": bi, "bhn": bhn}


# ----------------------------------------------------------------------------
# Fused kernel: one grid step == CHUNK time steps for one batch block.
#   - chunk-level input projection (3 per-gate matmuls over CHUNK*B rows) into
#     VMEM scratch (no gi HBM round trip),
#   - then a fori_loop recurrence carrying h in vregs, writing each step's h
#     into the (CHUNK, B_BLOCK, H) output block.
# ----------------------------------------------------------------------------
def _pgru_kernel(x_ref, wih_ref, whh_ref, bi_ref, bhn_ref, out_ref,
                 h_s, gir_s, giz_s, gin_s, *, chunk, b_block, hidden, f2):
    c = pl.program_id(1)  # time-chunk index (sequential / "arbitrary")

    @pl.when(c == 0)
    def _():
        h_s[...] = jnp.zeros_like(h_s)

    # ---- fused, time-independent input projection for the whole chunk ----
    # One matmul per gate over CHUNK*B_BLOCK rows; results stay in VMEM.
    xc = x_ref[...].reshape(chunk * b_block, f2)
    gir_s[...] = (jnp.dot(xc, wih_ref[0], preferred_element_type=jnp.float32)
                  + bi_ref[0])
    giz_s[...] = (jnp.dot(xc, wih_ref[1], preferred_element_type=jnp.float32)
                  + bi_ref[1])
    gin_s[...] = (jnp.dot(xc, wih_ref[2], preferred_element_type=jnp.float32)
                  + bi_ref[2])

    # Hoisted out of the time loop (once per chunk, not per step).
    whh_r = whh_ref[0]
    whh_z = whh_ref[1]
    whh_n = whh_ref[2]
    bhn = jnp.broadcast_to(bhn_ref[...], (b_block, hidden))

    def step(i, h):
        row = pl.multiple_of(i * b_block, 8)          # sublane-aligned chunk row
        gi_r = gir_s[pl.ds(row, b_block), :]
        gi_z = giz_s[pl.ds(row, b_block), :]
        gi_n = gin_s[pl.ds(row, b_block), :]
        gh_r = jnp.dot(h, whh_r, preferred_element_type=jnp.float32)
        gh_z = jnp.dot(h, whh_z, preferred_element_type=jnp.float32)
        gh_n = jnp.dot(h, whh_n, preferred_element_type=jnp.float32)
        r = jax.nn.sigmoid(gi_r + gh_r)
        z = jax.nn.sigmoid(gi_z + gh_z)
        n = jnp.tanh(gi_n + r * (gh_n + bhn))
        h_new = n + z * (h - n)                       # == (1-z)*n + z*h, one fewer mul
        out_ref[i] = h_new
        return h_new

    h_s[...] = lax.fori_loop(0, chunk, step, h_s[...], unroll=True)


# ----------------------------------------------------------------------------
# Wrapper: pyramid reshape + padding + the single pallas_call.
# ----------------------------------------------------------------------------
def pgru_forward(x, params, *, chunk_steps=16):
    """pGRULayer.forward.

    x:      (T, B, F) float32, time-major (batch_first=False).
    params: output of pgru_pack_params(w_ih, w_hh, b_ih, b_hh).
    Returns (output (T//2, B, H), hidden (1, B, H)).
    """
    x = jnp.asarray(x, jnp.float32)
    T, B, F = x.shape
    wih_t = params["wih_t"]
    whh_t = params["whh_t"]
    bi = params["bi"]
    bhn = params["bhn"]
    H = whh_t.shape[-1]
    F2 = 2 * F

    # pyramid step: truncate odd T, then row-major view (T,B,F) -> (T//2,B,2F)
    T_even = (T // 2) * 2
    T2 = T_even // 2
    if T2 == 0:
        return (jnp.zeros((0, B, H), jnp.float32),
                jnp.zeros((1, B, H), jnp.float32))
    # TODO(synk): this matches the literal torch `.view` on the time-major
    # contiguous tensor (as the module is written, batch_first=False); if the
    # intended semantics is per-utterance frame pairing (concat x[0::2],
    # x[1::2] along features), swap this reshape accordingly.
    x2 = x[:T_even].reshape(T2, B, F2)

    B_pad = _round_up(B, 8)                       # f32 sublane alignment
    CHUNK = max(1, min(T2, chunk_steps))
    T2_pad = _round_up(T2, CHUNK)
    n_chunks = T2_pad // CHUNK
    # Split the batch "parallel" axis only when it is big enough to pay off on
    # a 2-TensorCore chip (v7x); for small B the chain is latency-bound.
    if B_pad >= 512 and B_pad % 16 == 0:
        n_bblk = 2
    else:
        n_bblk = 1
    B_BLOCK = B_pad // n_bblk

    x2_p = jnp.pad(x2, ((0, T2_pad - T2), (0, B_pad - B), (0, 0)))

    kernel = functools.partial(_pgru_kernel, chunk=CHUNK, b_block=B_BLOCK,
                               hidden=H, f2=F2)

    out_p = pl.pallas_call(
        kernel,
        out_shape=jax.ShapeDtypeStruct((T2_pad, B_pad, H), jnp.float32),
        grid_spec=pltpu.PrefetchScalarGridSpec(
            num_scalar_prefetch=0,
            grid=(n_bblk, n_chunks),
            in_specs=[
                pl.BlockSpec((CHUNK, B_BLOCK, F2), lambda b, c: (c, b, 0)),   # x chunk
                pl.BlockSpec((3, F2, H), lambda b, c: (0, 0, 0)),   # W_ih^T (resident)
                pl.BlockSpec((3, H, H), lambda b, c: (0, 0, 0)),    # W_hh^T (resident)
                pl.BlockSpec((3, 1, H), lambda b, c: (0, 0, 0)),    # folded input bias
                pl.BlockSpec((1, H), lambda b, c: (0, 0)),          # b_hn
            ],
            out_specs=pl.BlockSpec((CHUNK, B_BLOCK, H), lambda b, c: (c, b, 0)),
            scratch_shapes=[
                pltpu.VMEM((B_BLOCK, H), jnp.float32),              # h carry
                pltpu.VMEM((CHUNK * B_BLOCK, H), jnp.float32),      # gi_r
                pltpu.VMEM((CHUNK * B_BLOCK, H), jnp.float32),      # gi_z
                pltpu.VMEM((CHUNK * B_BLOCK, H), jnp.float32),      # gi_n
            ],
        ),
        compiler_params=pltpu.CompilerParams(
            # NOTE: no blanket vmem_limit_bytes (over-requesting is wrong on
            # v7x's 64 MiB VMEM). Blocks here are small; for very large
            # (B, H, F) reduce chunk_steps instead of raising the VMEM limit.
            dimension_semantics=("parallel", "arbitrary"),
        ),
    )(x2_p, wih_t, whh_t, bi, bhn)

    out = out_p[:T2, :B, :]
    hidden = out[T2 - 1:T2]     # 1 layer, unidirectional: h_n == last output step
    return out, hidden


# ----------------------------------------------------------------------------
# Pure-JAX reference (lax.scan) for correctness checking.
# ----------------------------------------------------------------------------
def pgru_forward_ref(x, w_ih, w_hh, b_ih, b_hh):
    x = jnp.asarray(x, jnp.float32)
    T, B, F = x.shape
    H = w_hh.shape[1]
    T_even = (T // 2) * 2
    x2 = x[:T_even].reshape(T_even // 2, B, 2 * F)

    def step(h, xt):
        gi = xt @ w_ih.T + b_ih
        gh = h @ w_hh.T + b_hh
        i_r, i_z, i_n = jnp.split(gi, 3, axis=-1)
        h_r, h_z, h_n = jnp.split(gh, 3, axis=-1)
        r = jax.nn.sigmoid(i_r + h_r)
        z = jax.nn.sigmoid(i_z + h_z)
        n = jnp.tanh(i_n + r * h_n)
        h_new = (1.0 - z) * n + z * h
        return h_new, h_new

    h0 = jnp.zeros((B, H), jnp.float32)
    h_last, outs = lax.scan(step, h0, x2)
    return outs, h_last[None]


if __name__ == "__main__":
    # Small shapes consistent with the module: time-major (T, B, F).
    T, B, F, H = 9, 4, 8, 32          # odd T exercises the truncation branch

    key = jax.random.PRNGKey(0)
    kx, k1, k2, k3, k4 = jax.random.split(key, 5)

    x = jax.random.normal(kx, (T, B, F), dtype=jnp.float32)

    # PyTorch nn.GRU parameter shapes: weight_ih_l0 (3H, 2F), weight_hh_l0 (3H, H).
    scale = 1.0 / np.sqrt(H)
    w_ih = jax.random.uniform(k1, (3 * H, 2 * F), jnp.float32, -scale, scale)
    w_hh = jax.random.uniform(k2, (3 * H, H), jnp.float32, -scale, scale)
    b_ih = jax.random.uniform(k3, (3 * H,), jnp.float32, -scale, scale)
    b_hh = jax.random.uniform(k4, (3 * H,), jnp.float32, -scale, scale)

    params = pgru_pack_params(w_ih, w_hh, b_ih, b_hh)   # once per weight set
    out, hidden = pgru_forward(x, params, chunk_steps=16)
    out = jax.block_until_ready(out)
    hidden = jax.block_until_ready(hidden)

    out_ref, hidden_ref = pgru_forward_ref(x, w_ih, w_hh, b_ih, b_hh)
    np.testing.assert_allclose(np.asarray(out), np.asarray(out_ref),
                               rtol=5e-3, atol=5e-3)
    np.testing.assert_allclose(np.asarray(hidden), np.asarray(hidden_ref),
                               rtol=5e-3, atol=5e-3)

    assert out.shape == (T // 2, B, H)
    assert hidden.shape == (1, B, H)
    print("KERNEL_OK")
</pallas_src>

<mosaic_0001>
module attributes {stable_mosaic.version = 11 : i64} {
  func.func @_pgru_kernel(%arg0: i32, %arg1: i32, %arg2: memref<4x8x16xf32, #tpu.memory_space<vmem>>, %arg3: memref<3x16x32xf32, #tpu.memory_space<vmem>>, %arg4: memref<3x32x32xf32, #tpu.memory_space<vmem>>, %arg5: memref<3x1x32xf32, #tpu.memory_space<vmem>>, %arg6: memref<1x32xf32, #tpu.memory_space<vmem>>, %arg7: memref<4x8x32xf32, #tpu.memory_space<vmem>>, %arg8: memref<8x32xf32, #tpu.memory_space<vmem>>, %arg9: memref<32x32xf32, #tpu.memory_space<vmem>>, %arg10: memref<32x32xf32, #tpu.memory_space<vmem>>, %arg11: memref<32x32xf32, #tpu.memory_space<vmem>>) attributes {dimension_semantics = [#tpu.dimension_semantics<parallel>, #tpu.dimension_semantics<arbitrary>], iteration_bounds = array<i64: 1, 1>, scalar_prefetch = 0 : i64, scratch_operands = 4 : i64, tpu.core_type = #tpu.core_type<tc>, window_params = [{transform_indices = @transform_0, window_bounds = array<i64: 4, 8, 16>}, {pipeline_mode = #tpu.pipeline_mode<synchronous>, transform_indices = @transform_1, window_bounds = array<i64: 3, 16, 32>}, {pipeline_mode = #tpu.pipeline_mode<synchronous>, transform_indices = @transform_2, window_bounds = array<i64: 3, 32, 32>}, {pipeline_mode = #tpu.pipeline_mode<synchronous>, transform_indices = @transform_3, window_bounds = array<i64: 3, 1, 32>}, {pipeline_mode = #tpu.pipeline_mode<synchronous>, transform_indices = @transform_4, window_bounds = array<i64: 1, 32>}, {transform_indices = @transform_5, window_bounds = array<i64: 4, 8, 32>}]} {
    %c0_i32 = arith.constant 0 : i32
    %0 = arith.cmpi eq, %arg1, %c0_i32 : i32
    %1 = arith.extui %0 : i1 to i32
    %c0_i32_0 = arith.constant 0 : i32
    %2 = arith.cmpi ne, %1, %c0_i32_0 : i32
    scf.if %2 {
      %cst_86 = arith.constant 0.000000e+00 : f32
      %176 = vector.broadcast %cst_86 : f32 to vector<8x32xf32>
      %c0_87 = arith.constant 0 : index
      %c0_88 = arith.constant 0 : index
      %177 = vector.load %arg8[%c0_87, %c0_88] : memref<8x32xf32, #tpu.memory_space<vmem>>, vector<8x32xf32>
      tpu.vector_store %arg8[%c0_87, %c0_88], %176 {strides = array<i32>} : memref<8x32xf32, #tpu.memory_space<vmem>>, vector<8x32xf32>,
    } else {
    }
    %c0 = arith.constant 0 : index
    %c0_1 = arith.constant 0 : index
    %c0_2 = arith.constant 0 : index
    %3 = vector.load %arg2[%c0, %c0_1, %c0_2] : memref<4x8x16xf32, #tpu.memory_space<vmem>>, vector<4x8x16xf32>
    %4 = vector.shape_cast %3 : vector<4x8x16xf32> to vector<32x16xf32>
    %c0_3 = arith.constant 0 : index
    %c0_4 = arith.constant 0 : index
    %c0_5 = arith.constant 0 : index
    %5 = vector.load %arg3[%c0_3, %c0_4, %c0_5] : memref<3x16x32xf32, #tpu.memory_space<vmem>>, vector<1x16x32xf32>
    %6 = vector.shape_cast %5 : vector<1x16x32xf32> to vector<16x32xf32>
    %cst = arith.constant dense<0.000000e+00> : vector<32x32xf32>
    %7 = tpu.matmul %4, %6, %cst {dimension_numbers = #tpu.dot_dimension_numbers<[1], [0], [0], [1], [0, 0, 1, 1], [], []>} : vector<32x16xf32>, vector<16x32xf32>, vector<32x32xf32> -> vector<32x32xf32>
    %c0_6 = arith.constant 0 : index
    %c0_7 = arith.constant 0 : index
    %c0_8 = arith.constant 0 : index
    %8 = vector.load %arg5[%c0_6, %c0_7, %c0_8] : memref<3x1x32xf32, #tpu.memory_space<vmem>>, vector<1x1x32xf32>
    %9 = vector.shape_cast %8 : vector<1x1x32xf32> to vector<1x32xf32>
    %10 = vector.broadcast %9 : vector<1x32xf32> to vector<32x32xf32>
    %11 = arith.addf %7, %10 : vector<32x32xf32>
    %c0_9 = arith.constant 0 : index
    %c0_10 = arith.constant 0 : index
    %12 = vector.load %arg9[%c0_9, %c0_10] : memref<32x32xf32, #tpu.memory_space<vmem>>, vector<32x32xf32>
    tpu.vector_store %arg9[%c0_9, %c0_10], %11 {strides = array<i32>} : memref<32x32xf32, #tpu.memory_space<vmem>>, vector<32x32xf32>,
    %c1 = arith.constant 1 : index
    %c0_11 = arith.constant 0 : index
    %c0_12 = arith.constant 0 : index
    %13 = vector.load %arg3[%c1, %c0_11, %c0_12] : memref<3x16x32xf32, #tpu.memory_space<vmem>>, vector<1x16x32xf32>
    %14 = vector.shape_cast %13 : vector<1x16x32xf32> to vector<16x32xf32>
    %cst_13 = arith.constant dense<0.000000e+00> : vector<32x32xf32>
    %15 = tpu.matmul %4, %14, %cst_13 {dimension_numbers = #tpu.dot_dimension_numbers<[1], [0], [0], [1], [0, 0, 1, 1], [], []>} : vector<32x16xf32>, vector<16x32xf32>, vector<32x32xf32> -> vector<32x32xf32>
    %c1_14 = arith.constant 1 : index
    %c0_15 = arith.constant 0 : index
    %c0_16 = arith.constant 0 : index
    %16 = vector.load %arg5[%c1_14, %c0_15, %c0_16] : memref<3x1x32xf32, #tpu.memory_space<vmem>>, vector<1x1x32xf32>
    %17 = vector.shape_cast %16 : vector<1x1x32xf32> to vector<1x32xf32>
    %18 = vector.broadcast %17 : vector<1x32xf32> to vector<32x32xf32>
    %19 = arith.addf %15, %18 : vector<32x32xf32>
    %c0_17 = arith.constant 0 : index
    %c0_18 = arith.constant 0 : index
    %20 = vector.load %arg10[%c0_17, %c0_18] : memref<32x32xf32, #tpu.memory_space<vmem>>, vector<32x32xf32>
    tpu.vector_store %arg10[%c0_17, %c0_18], %19 {strides = array<i32>} : memref<32x32xf32, #tpu.memory_space<vmem>>, vector<32x32xf32>,
    %c2 = arith.constant 2 : index
    %c0_19 = arith.constant 0 : index
    %c0_20 = arith.constant 0 : index
    %21 = vector.load %arg3[%c2, %c0_19, %c0_20] : memref<3x16x32xf32, #tpu.memory_space<vmem>>, vector<1x16x32xf32>
    %22 = vector.shape_cast %21 : vector<1x16x32xf32> to vector<16x32xf32>
    %cst_21 = arith.constant dense<0.000000e+00> : vector<32x32xf32>
    %23 = tpu.matmul %4, %22, %cst_21 {dimension_numbers = #tpu.dot_dimension_numbers<[1], [0], [0], [1], [0, 0, 1, 1], [], []>} : vector<32x16xf32>, vector<16x32xf32>, vector<32x32xf32> -> vector<32x32xf32>
    %c2_22 = arith.constant 2 : index
    %c0_23 = arith.constant 0 : index
    %c0_24 = arith.constant 0 : index
    %24 = vector.load %arg5[%c2_22, %c0_23, %c0_24] : memref<3x1x32xf32, #tpu.memory_space<vmem>>, vector<1x1x32xf32>
    %25 = vector.shape_cast %24 : vector<1x1x32xf32> to vector<1x32xf32>
    %26 = vector.broadcast %25 : vector<1x32xf32> to vector<32x32xf32>
    %27 = arith.addf %23, %26 : vector<32x32xf32>
    %c0_25 = arith.constant 0 : index
    %c0_26 = arith.constant 0 : index
    %28 = vector.load %arg11[%c0_25, %c0_26] : memref<32x32xf32, #tpu.memory_space<vmem>>, vector<32x32xf32>
    tpu.vector_store %arg11[%c0_25, %c0_26], %27 {strides = array<i32>} : memref<32x32xf32, #tpu.memory_space<vmem>>, vector<32x32xf32>,
    %c0_27 = arith.constant 0 : index
    %c0_28 = arith.constant 0 : index
    %c0_29 = arith.constant 0 : index
    %29 = vector.load %arg4[%c0_27, %c0_28, %c0_29] : memref<3x32x32xf32, #tpu.memory_space<vmem>>, vector<1x32x32xf32>
    %30 = vector.shape_cast %29 : vector<1x32x32xf32> to vector<32x32xf32>
    %c1_30 = arith.constant 1 : index
    %c0_31 = arith.constant 0 : index
    %c0_32 = arith.constant 0 : index
    %31 = vector.load %arg4[%c1_30, %c0_31, %c0_32] : memref<3x32x32xf32, #tpu.memory_space<vmem>>, vector<1x32x32xf32>
    %32 = vector.shape_cast %31 : vector<1x32x32xf32> to vector<32x32xf32>
    %c2_33 = arith.constant 2 : index
    %c0_34 = arith.constant 0 : index
    %c0_35 = arith.constant 0 : index
    %33 = vector.load %arg4[%c2_33, %c0_34, %c0_35] : memref<3x32x32xf32, #tpu.memory_space<vmem>>, vector<1x32x32xf32>
    %34 = vector.shape_cast %33 : vector<1x32x32xf32> to vector<32x32xf32>
    %c0_36 = arith.constant 0 : index
    %c0_37 = arith.constant 0 : index
    %35 = vector.load %arg6[%c0_36, %c0_37] : memref<1x32xf32, #tpu.memory_space<vmem>>, vector<1x32xf32>
    %36 = vector.shape_cast %35 : vector<1x32xf32> to vector<1x32xf32>
    %37 = vector.broadcast %36 : vector<1x32xf32> to vector<8x32xf32>
    %c0_38 = arith.constant 0 : index
    %c0_39 = arith.constant 0 : index
    %38 = vector.load %arg8[%c0_38, %c0_39] : memref<8x32xf32, #tpu.memory_space<vmem>>, vector<8x32xf32>
    %c0_i32_40 = arith.constant 0 : i32
    %c8_i32 = arith.constant 8 : i32
    %39 = arith.muli %c0_i32_40, %c8_i32 : i32
    %40 = tpu.assume_multiple %39, 8 : i32
    %41 = arith.index_cast %40 : i32 to index
    %c0_41 = arith.constant 0 : index
    %42 = vector.load %arg9[%41, %c0_41] : memref<32x32xf32, #tpu.memory_space<vmem>>, vector<8x32xf32>
    %43 = arith.index_cast %40 : i32 to index
    %c0_42 = arith.constant 0 : index
    %44 = vector.load %arg10[%43, %c0_42] : memref<32x32xf32, #tpu.memory_space<vmem>>, vector<8x32xf32>
    %45 = arith.index_cast %40 : i32 to index
    %c0_43 = arith.constant 0 : index
    %46 = vector.load %arg11[%45, %c0_43] : memref<32x32xf32, #tpu.memory_space<vmem>>, vector<8x32xf32>
    %cst_44 = arith.constant dense<0.000000e+00> : vector<8x32xf32>
    %47 = tpu.matmul %38, %30, %cst_44 {dimension_numbers = #tpu.dot_dimension_numbers<[1], [0], [0], [1], [0, 0, 1, 1], [], []>} : vector<8x32xf32>, vector<32x32xf32>, vector<8x32xf32> -> vector<8x32xf32>
    %cst_45 = arith.constant dense<0.000000e+00> : vector<8x32xf32>
    %48 = tpu.matmul %38, %32, %cst_45 {dimension_numbers = #tpu.dot_dimension_numbers<[1], [0], [0], [1], [0, 0, 1, 1], [], []>} : vector<8x32xf32>, vector<32x32xf32>, vector<8x32xf32> -> vector<8x32xf32>
    %cst_46 = arith.constant dense<0.000000e+00> : vector<8x32xf32>
    %49 = tpu.matmul %38, %34, %cst_46 {dimension_numbers = #tpu.dot_dimension_numbers<[1], [0], [0], [1], [0, 0, 1, 1], [], []>} : vector<8x32xf32>, vector<32x32xf32>, vector<8x32xf32> -> vector<8x32xf32>
    %50 = arith.addf %42, %47 : vector<8x32xf32>
    %51 = arith.negf %50 : vector<8x32xf32>
    %52 = math.exp %51 : vector<8x32xf32>
    %cst_47 = arith.constant 1.000000e+00 : f32
    %53 = vector.broadcast %cst_47 : f32 to vector<8x32xf32>
    %54 = arith.addf %53, %52 : vector<8x32xf32>
    %55 = arith.divf %53, %54 : vector<8x32xf32>
    %56 = arith.addf %44, %48 : vector<8x32xf32>
    %57 = arith.negf %56 : vector<8x32xf32>
    %58 = math.exp %57 : vector<8x32xf32>
    %cst_48 = arith.constant 1.000000e+00 : f32
    %59 = vector.broadcast %cst_48 : f32 to vector<8x32xf32>
    %60 = arith.addf %59, %58 : vector<8x32xf32>
    %61 = arith.divf %59, %60 : vector<8x32xf32>
    %62 = arith.addf %49, %37 : vector<8x32xf32>
    %63 = arith.mulf %55, %62 : vector<8x32xf32>
    %64 = arith.addf %46, %63 : vector<8x32xf32>
    %65 = math.tanh %64 : vector<8x32xf32>
    %66 = arith.subf %38, %65 : vector<8x32xf32>
    %67 = arith.mulf %61, %66 : vector<8x32xf32>
    %68 = arith.addf %65, %67 : vector<8x32xf32>
    %69 = arith.index_cast %c0_i32_40 : i32 to index
    %c0_49 = arith.constant 0 : index
    %c0_50 = arith.constant 0 : index
    %70 = vector.load %arg7[%69, %c0_49, %c0_50] : memref<4x8x32xf32, #tpu.memory_space<vmem>>, vector<1x8x32xf32>
    %71 = vector.shape_cast %70 : vector<1x8x32xf32> to vector<8x32xf32>
    %72 = vector.shape_cast %68 : vector<8x32xf32> to vector<1x8x32xf32>
    tpu.vector_store %arg7[%69, %c0_49, %c0_50], %72 {strides = array<i32>} : memref<4x8x32xf32, #tpu.memory_space<vmem>>, vector<1x8x32xf32>,
    %c1_i32 = arith.constant 1 : i32
    %c8_i32_51 = arith.constant 8 : i32
    %73 = arith.muli %c1_i32, %c8_i32_51 : i32
    %74 = tpu.assume_multiple %73, 8 : i32
    %75 = arith.index_cast %74 : i32 to index
    %c0_52 = arith.constant 0 : index
    %76 = vector.load %arg9[%75, %c0_52] : memref<32x32xf32, #tpu.memory_space<vmem>>, vector<8x32xf32>
    %77 = arith.index_cast %74 : i32 to index
    %c0_53 = arith.constant 0 : index
    %78 = vector.load %arg10[%77, %c0_53] : memref<32x32xf32, #tpu.memory_space<vmem>>, vector<8x32xf32>
    %79 = arith.index_cast %74 : i32 to index
    %c0_54 = arith.constant 0 : index
    %80 = vector.load %arg11[%79, %c0_54] : memref<32x32xf32, #tpu.memory_space<vmem>>, vector<8x32xf32>
    %cst_55 = arith.constant dense<0.000000e+00> : vector<8x32xf32>
    %81 = tpu.matmul %68, %30, %cst_55 {dimension_numbers = #tpu.dot_dimension_numbers<[1], [0], [0], [1], [0, 0, 1, 1], [], []>} : vector<8x32xf32>, vector<32x32xf32>, vector<8x32xf32> -> vector<8x32xf32>
    %cst_56 = arith.constant dense<0.000000e+00> : vector<8x32xf32>
    %82 = tpu.matmul %68, %32, %cst_56 {dimension_numbers = #tpu.dot_dimension_numbers<[1], [0], [0], [1], [0, 0, 1, 1], [], []>} : vector<8x32xf32>, vector<32x32xf32>, vector<8x32xf32> -> vector<8x32xf32>
    %cst_57 = arith.constant dense<0.000000e+00> : vector<8x32xf32>
    %83 = tpu.matmul %68, %34, %cst_57 {dimension_numbers = #tpu.dot_dimension_numbers<[1], [0], [0], [1], [0, 0, 1, 1], [], []>} : vector<8x32xf32>, vector<32x32xf32>, vector<8x32xf32> -> vector<8x32xf32>
    %84 = arith.addf %76, %81 : vector<8x32xf32>
    %85 = arith.negf %84 : vector<8x32xf32>
    %86 = math.exp %85 : vector<8x32xf32>
    %cst_58 = arith.constant 1.000000e+00 : f32
    %87 = vector.broadcast %cst_58 : f32 to vector<8x32xf32>
    %88 = arith.addf %87, %86 : vector<8x32xf32>
    %89 = arith.divf %87, %88 : vector<8x32xf32>
    %90 = arith.addf %78, %82 : vector<8x32xf32>
    %91 = arith.negf %90 : vector<8x32xf32>
    %92 = math.exp %91 : vector<8x32xf32>
    %cst_59 = arith.constant 1.000000e+00 : f32
    %93 = vector.broadcast %cst_59 : f32 to vector<8x32xf32>
    %94 = arith.addf %93, %92 : vector<8x32xf32>
    %95 = arith.divf %93, %94 : vector<8x32xf32>
    %96 = arith.addf %83, %37 : vector<8x32xf32>
    %97 = arith.mulf %89, %96 : vector<8x32xf32>
    %98 = arith.addf %80, %97 : vector<8x32xf32>
    %99 = math.tanh %98 : vector<8x32xf32>
    %100 = arith.subf %68, %99 : vector<8x32xf32>
    %101 = arith.mulf %95, %100 : vector<8x32xf32>
    %102 = arith.addf %99, %101 : vector<8x32xf32>
    %103 = arith.index_cast %c1_i32 : i32 to index
    %c0_60 = arith.constant 0 : index
    %c0_61 = arith.constant 0 : index
    %104 = vector.load %arg7[%103, %c0_60, %c0_61] : memref<4x8x32xf32, #tpu.memory_space<vmem>>, vector<1x8x32xf32>
    %105 = vector.shape_cast %104 : vector<1x8x32xf32> to vector<8x32xf32>
    %106 = vector.shape_cast %102 : vector<8x32xf32> to vector<1x8x32xf32>
    tpu.vector_store %arg7[%103, %c0_60, %c0_61], %106 {strides = array<i32>} : memref<4x8x32xf32, #tpu.memory_space<vmem>>, vector<1x8x32xf32>,
    %c2_i32 = arith.constant 2 : i32
    %c8_i32_62 = arith.constant 8 : i32
    %107 = arith.muli %c2_i32, %c8_i32_62 : i32
    %108 = tpu.assume_multiple %107, 8 : i32
    %109 = arith.index_cast %108 : i32 to index
    %c0_63 = arith.constant 0 : index
    %110 = vector.load %arg9[%109, %c0_63] : memref<32x32xf32, #tpu.memory_space<vmem>>, vector<8x32xf32>
    %111 = arith.index_cast %108 : i32 to index
    %c0_64 = arith.constant 0 : index
    %112 = vector.load %arg10[%111, %c0_64] : memref<32x32xf32, #tpu.memory_space<vmem>>, vector<8x32xf32>
    %113 = arith.index_cast %108 : i32 to index
    %c0_65 = arith.constant 0 : index
    %114 = vector.load %arg11[%113, %c0_65] : memref<32x32xf32, #tpu.memory_space<vmem>>, vector<8x32xf32>
    %cst_66 = arith.constant dense<0.000000e+00> : vector<8x32xf32>
    %115 = tpu.matmul %102, %30, %cst_66 {dimension_numbers = #tpu.dot_dimension_numbers<[1], [0], [0], [1], [0, 0, 1, 1], [], []>} : vector<8x32xf32>, vector<32x32xf32>, vector<8x32xf32> -> vector<8x32xf32>
    %cst_67 = arith.constant dense<0.000000e+00> : vector<8x32xf32>
    %116 = tpu.matmul %102, %32, %cst_67 {dimension_numbers = #tpu.dot_dimension_numbers<[1], [0], [0], [1], [0, 0, 1, 1], [], []>} : vector<8x32xf32>, vector<32x32xf32>, vector<8x32xf32> -> vector<8x32xf32>
    %cst_68 = arith.constant dense<0.000000e+00> : vector<8x32xf32>
    %117 = tpu.matmul %102, %34, %cst_68 {dimension_numbers = #tpu.dot_dimension_numbers<[1], [0], [0], [1], [0, 0, 1, 1], [], []>} : vector<8x32xf32>, vector<32x32xf32>, vector<8x32xf32> -> vector<8x32xf32>
    %118 = arith.addf %110, %115 : vector<8x32xf32>
    %119 = arith.negf %118 : vector<8x32xf32>
    %120 = math.exp %119 : vector<8x32xf32>
    %cst_69 = arith.constant 1.000000e+00 : f32
    %121 = vector.broadcast %cst_69 : f32 to vector<8x32xf32>
    %122 = arith.addf %121, %120 : vector<8x32xf32>
    %123 = arith.divf %121, %122 : vector<8x32xf32>
    %124 = arith.addf %112, %116 : vector<8x32xf32>
    %125 = arith.negf %124 : vector<8x32xf32>
    %126 = math.exp %125 : vector<8x32xf32>
    %cst_70 = arith.constant 1.000000e+00 : f32
    %127 = vector.broadcast %cst_70 : f32 to vector<8x32xf32>
    %128 = arith.addf %127, %126 : vector<8x32xf32>
    %129 = arith.divf %127, %128 : vector<8x32xf32>
    %130 = arith.addf %117, %37 : vector<8x32xf32>
    %131 = arith.mulf %123, %130 : vector<8x32xf32>
    %132 = arith.addf %114, %131 : vector<8x32xf32>
    %133 = math.tanh %132 : vector<8x32xf32>
    %134 = arith.subf %102, %133 : vector<8x32xf32>
    %135 = arith.mulf %129, %134 : vector<8x32xf32>
    %136 = arith.addf %133, %135 : vector<8x32xf32>
    %137 = arith.index_cast %c2_i32 : i32 to index
    %c0_71 = arith.constant 0 : index
    %c0_72 = arith.constant 0 : index
    %138 = vector.load %arg7[%137, %c0_71, %c0_72] : memref<4x8x32xf32, #tpu.memory_space<vmem>>, vector<1x8x32xf32>
    %139 = vector.shape_cast %138 : vector<1x8x32xf32> to vector<8x32xf32>
    %140 = vector.shape_cast %136 : vector<8x32xf32> to vector<1x8x32xf32>
    tpu.vector_store %arg7[%137, %c0_71, %c0_72], %140 {strides = array<i32>} : memref<4x8x32xf32, #tpu.memory_space<vmem>>, vector<1x8x32xf32>,
    %c3_i32 = arith.constant 3 : i32
    %c8_i32_73 = arith.constant 8 : i32
    %141 = arith.muli %c3_i32, %c8_i32_73 : i32
    %142 = tpu.assume_multiple %141, 8 : i32
    %143 = arith.index_cast %142 : i32 to index
    %c0_74 = arith.constant 0 : index
    %144 = vector.load %arg9[%143, %c0_74] : memref<32x32xf32, #tpu.memory_space<vmem>>, vector<8x32xf32>
    %145 = arith.index_cast %142 : i32 to index
    %c0_75 = arith.constant 0 : index
    %146 = vector.load %arg10[%145, %c0_75] : memref<32x32xf32, #tpu.memory_space<vmem>>, vector<8x32xf32>
    %147 = arith.index_cast %142 : i32 to index
    %c0_76 = arith.constant 0 : index
    %148 = vector.load %arg11[%147, %c0_76] : memref<32x32xf32, #tpu.memory_space<vmem>>, vector<8x32xf32>
    %cst_77 = arith.constant dense<0.000000e+00> : vector<8x32xf32>
    %149 = tpu.matmul %136, %30, %cst_77 {dimension_numbers = #tpu.dot_dimension_numbers<[1], [0], [0], [1], [0, 0, 1, 1], [], []>} : vector<8x32xf32>, vector<32x32xf32>, vector<8x32xf32> -> vector<8x32xf32>
    %cst_78 = arith.constant dense<0.000000e+00> : vector<8x32xf32>
    %150 = tpu.matmul %136, %32, %cst_78 {dimension_numbers = #tpu.dot_dimension_numbers<[1], [0], [0], [1], [0, 0, 1, 1], [], []>} : vector<8x32xf32>, vector<32x32xf32>, vector<8x32xf32> -> vector<8x32xf32>
    %cst_79 = arith.constant dense<0.000000e+00> : vector<8x32xf32>
    %151 = tpu.matmul %136, %34, %cst_79 {dimension_numbers = #tpu.dot_dimension_numbers<[1], [0], [0], [1], [0, 0, 1, 1], [], []>} : vector<8x32xf32>, vector<32x32xf32>, vector<8x32xf32> -> vector<8x32xf32>
    %152 = arith.addf %144, %149 : vector<8x32xf32>
    %153 = arith.negf %152 : vector<8x32xf32>
    %154 = math.exp %153 : vector<8x32xf32>
    %cst_80 = arith.constant 1.000000e+00 : f32
    %155 = vector.broadcast %cst_80 : f32 to vector<8x32xf32>
    %156 = arith.addf %155, %154 : vector<8x32xf32>
    %157 = arith.divf %155, %156 : vector<8x32xf32>
    %158 = arith.addf %146, %150 : vector<8x32xf32>
    %159 = arith.negf %158 : vector<8x32xf32>
    %160 = math.exp %159 : vector<8x32xf32>
    %cst_81 = arith.constant 1.000000e+00 : f32
    %161 = vector.broadcast %cst_81 : f32 to vector<8x32xf32>
    %162 = arith.addf %161, %160 : vector<8x32xf32>
    %163 = arith.divf %161, %162 : vector<8x32xf32>
    %164 = arith.addf %151, %37 : vector<8x32xf32>
    %165 = arith.mulf %157, %164 : vector<8x32xf32>
    %166 = arith.addf %148, %165 : vector<8x32xf32>
    %167 = math.tanh %166 : vector<8x32xf32>
    %168 = arith.subf %136, %167 : vector<8x32xf32>
    %169 = arith.mulf %163, %168 : vector<8x32xf32>
    %170 = arith.addf %167, %169 : vector<8x32xf32>
    %171 = arith.index_cast %c3_i32 : i32 to index
    %c0_82 = arith.constant 0 : index
    %c0_83 = arith.constant 0 : index
    %172 = vector.load %arg7[%171, %c0_82, %c0_83] : memref<4x8x32xf32, #tpu.memory_space<vmem>>, vector<1x8x32xf32>
    %173 = vector.shape_cast %172 : vector<1x8x32xf32> to vector<8x32xf32>
    %174 = vector.shape_cast %170 : vector<8x32xf32> to vector<1x8x32xf32>
    tpu.vector_store %arg7[%171, %c0_82, %c0_83], %174 {strides = array<i32>} : memref<4x8x32xf32, #tpu.memory_space<vmem>>, vector<1x8x32xf32>,
    %c4_i32 = arith.constant 4 : i32
    %c0_84 = arith.constant 0 : index
    %c0_85 = arith.constant 0 : index
    %175 = vector.load %arg8[%c0_84, %c0_85] : memref<8x32xf32, #tpu.memory_space<vmem>>, vector<8x32xf32>
    tpu.vector_store %arg8[%c0_84, %c0_85], %170 {strides = array<i32>} : memref<8x32xf32, #tpu.memory_space<vmem>>, vector<8x32xf32>,
    return
  }
  func.func @transform_0(%arg0: i32, %arg1: i32) -> (i32, i32, i32) {
    %c0_i32 = arith.constant 0 : i32
    %c0_i32_0 = arith.constant 0 : i32
    return %arg1, %arg0, %c0_i32 : i32, i32, i32
  }
  func.func @transform_1(%arg0: i32, %arg1: i32) -> (i32, i32, i32) {
    %c0_i32 = arith.constant 0 : i32
    %c0_i32_0 = arith.constant 0 : i32
    %c0_i32_1 = arith.constant 0 : i32
    %c0_i32_2 = arith.constant 0 : i32
    return %c0_i32, %c0_i32_0, %c0_i32_1 : i32, i32, i32
  }
  func.func @transform_2(%arg0: i32, %arg1: i32) -> (i32, i32, i32) {
    %c0_i32 = arith.constant 0 : i32
    %c0_i32_0 = arith.constant 0 : i32
    %c0_i32_1 = arith.constant 0 : i32
    %c0_i32_2 = arith.constant 0 : i32
    return %c0_i32, %c0_i32_0, %c0_i32_1 : i32, i32, i32
  }
  func.func @transform_3(%arg0: i32, %arg1: i32) -> (i32, i32, i32) {
    %c0_i32 = arith.constant 0 : i32
    %c0_i32_0 = arith.constant 0 : i32
    %c0_i32_1 = arith.constant 0 : i32
    %c0_i32_2 = arith.constant 0 : i32
    return %c0_i32, %c0_i32_0, %c0_i32_1 : i32, i32, i32
  }
  func.func @transform_4(%arg0: i32, %arg1: i32) -> (i32, i32) {
    %c0_i32 = arith.constant 0 : i32
    %c0_i32_0 = arith.constant 0 : i32
    %c0_i32_1 = arith.constant 0 : i32
    return %c0_i32, %c0_i32_0 : i32, i32
  }
  func.func @transform_5(%arg0: i32, %arg1: i32) -> (i32, i32, i32) {
    %c0_i32 = arith.constant 0 : i32
    %c0_i32_0 = arith.constant 0 : i32
    return %arg1, %arg0, %c0_i32 : i32, i32, i32
  }
}

</mosaic_0001>

<llo_original>
// kernel: tpu_custom_call.1
$region0: #{tpu_custom_call.1}
  #allocation0 [shape = 'u32[]', space=smem, size = 0x4, offset = 0x4, fixed_abs, tag = 'smem constant byte address 0x4 - core index']
  #allocation1 [shape = 'u32[144,128]{1,0:T(1,128)}', space=vmem, size = 0x12000, scoped, tag = 'internal scratch']
  #allocation2 [shape = 'f32[8,32]{1,0:T(8,128)}', space=vmem, size = 0x1000, scoped, tag = 'scratch operand']
  #allocation3 [shape = 'f32[32,32]{1,0:T(8,128)}', space=vmem, size = 0x4000, scoped, tag = 'scratch operand']
  #allocation4 [shape = 'f32[32,32]{1,0:T(8,128)}', space=vmem, size = 0x4000, scoped, tag = 'scratch operand']
  #allocation5 [shape = 'f32[32,32]{1,0:T(8,128)}', space=vmem, size = 0x4000, scoped, tag = 'scratch operand']
  %s0 = inlined_call_operand.hbm [shape: f32[4,8,16], index: 0, kind: input, shape index: {}]
  %s1 = inlined_call_operand.hbm [shape: f32[3,16,32], index: 1, kind: input, shape index: {}]
  %s2 = inlined_call_operand.hbm [shape: f32[3,32,32], index: 2, kind: input, shape index: {}]
  %s3 = inlined_call_operand.vmem [shape: f32[3,1,32], index: 3, kind: input, shape index: {}]
  %s4 = inlined_call_operand.vmem [shape: f32[1,32], index: 4, kind: input, shape index: {}]
  %s5 = inlined_call_operand.hbm [shape: f32[4,8,32], index: 5, kind: output, shape index: {}]
  %s6 = sld [smem:[#allocation0]]
  $region46: #{tpu_custom_call.1} parent=0
    _
  %s8 = ssub.s32 1, %s6
  %s9 = scalar_select 0, %s8, %s6
  $region1: #{tpu_custom_call.1} parent=0
    #allocation6 [shape = 'u8[16384]{0}', space=vmem, size = 0x4000, scoped, tag = 'input window, operand 0, single buffered']
    #allocation7 [shape = 's32[1]{0}', space=sflag, size = 0x4, scoped, tag = 'scoped memory for tpu_custom_call.1']
    #allocation8 [shape = 's32[1]{0}', space=sflag, size = 0x4, scoped, tag = 'scoped memory for tpu_custom_call.1']
    #allocation9 [shape = 'u8[24576]{0}', space=vmem, size = 0x6000, scoped, tag = 'input window, operand 1, single buffered']
    #allocation10 [shape = 's32[1]{0}', space=sflag, size = 0x4, scoped, tag = 'scoped memory for tpu_custom_call.1']
    #allocation11 [shape = 'u8[49152]{0}', space=vmem, size = 0xc000, scoped, tag = 'input window, operand 2, single buffered']
    #allocation12 [shape = 'u8[16384]{0}', space=vmem, size = 0x4000, scoped, tag = 'output window, operand 0, single buffered']
    %10 = vsyncpa [#allocation7], 0
    %11 = vsyncpa [#allocation10], 0
    %12 = vsyncpa [#allocation8], 0
    // Predicated region
    $region2: #{tpu_custom_call.1} parent=1 // pred_check
      _
    $region3: #{tpu_custom_call.1} parent=1 // pred_check_branch
      %14 = sbr.rel (0) target = $region5
    $region4: #{tpu_custom_call.1} parent=1 // pred_region
      %s16 = ssub.s32 512, 512
      %17 = vsyncadd [#allocation7], %s16
      %s18 = sshll.u32 [#allocation6], 4
      %s19 = int_to_ptr.vmem [resolvable:$true] %s18
      %24 = dma.hbm_to_vmem [thread:$0]  %s0, 512, %s19, [#allocation7], 128, 128, 8
    $region5: #{tpu_custom_call.1} parent=1 // pred_fallthru
      _
    // Predicated region
    $region6: #{tpu_custom_call.1} parent=1 // pred_check
      _
    $region7: #{tpu_custom_call.1} parent=1 // pred_check_branch
      %26 = sbr.rel (0) target = $region9
    $region8: #{tpu_custom_call.1} parent=1 // pred_region
      %s28 = ssub.s32 768, 768
      %29 = vsyncadd [#allocation10], %s28
      %s30 = sshll.u32 [#allocation9], 4
      %s31 = int_to_ptr.vmem [resolvable:$true] %s30
      %36 = dma.hbm_to_vmem [thread:$0]  %s1, 768, %s31, [#allocation10], 128, 128, 8
    $region9: #{tpu_custom_call.1} parent=1 // pred_fallthru
      _
    // Predicated region
    $region10: #{tpu_custom_call.1} parent=1 // pred_check
      _
    $region11: #{tpu_custom_call.1} parent=1 // pred_check_branch
      %38 = sbr.rel (0) target = $region13
    $region12: #{tpu_custom_call.1} parent=1 // pred_region
      %s40 = ssub.s32 1536, 1536
      %41 = vsyncadd [#allocation10], %s40
      %s42 = sshll.u32 [#allocation11], 4
      %s43 = int_to_ptr.vmem [resolvable:$true] %s42
      %48 = dma.hbm_to_vmem [thread:$0]  %s2, 1536, %s43, [#allocation10], 128, 128, 8
    $region13: #{tpu_custom_call.1} parent=1 // pred_fallthru
      _
    // Predicated region
    $region14: #{tpu_custom_call.1} parent=1 // pred_check
      _
    $region15: #{tpu_custom_call.1} parent=1 // pred_check_branch
      %50 = sbr.rel (0) target = $region17
    $region16: #{tpu_custom_call.1} parent=1 // pred_region
      _
    $region17: #{tpu_custom_call.1} parent=1 // pred_fallthru
      _
    // Predicated region
    $region18: #{tpu_custom_call.1} parent=1 // pred_check
      _
    $region19: #{tpu_custom_call.1} parent=1 // pred_check_branch
      %52 = sbr.rel (0) target = $region21
    $region20: #{tpu_custom_call.1} parent=1 // pred_region
      _
    $region21: #{tpu_custom_call.1} parent=1 // pred_fallthru
      _
    // Predicated region
    $region22: #{tpu_custom_call.1} parent=1 // pred_check
      _
    $region23: #{tpu_custom_call.1} parent=1 // pred_check_branch
      %54 = sbr.rel (0) target = $region25
    $region24: #{tpu_custom_call.1} parent=1 // pred_region
      %55 = dma.done [#allocation7], 512
    $region25: #{tpu_custom_call.1} parent=1 // pred_fallthru
      _
    // Predicated region
    $region26: #{tpu_custom_call.1} parent=1 // pred_check
      _
    $region27: #{tpu_custom_call.1} parent=1 // pred_check_branch
      %57 = sbr.rel (0) target = $region29
    $region28: #{tpu_custom_call.1} parent=1 // pred_region
      %58 = dma.done [#allocation10], 768
    $region29: #{tpu_custom_call.1} parent=1 // pred_fallthru
      _
    // Predicated region
    $region30: #{tpu_custom_call.1} parent=1 // pred_check
      _
    $region31: #{tpu_custom_call.1} parent=1 // pred_check_branch
      %60 = sbr.rel (0) target = $region33
    $region32: #{tpu_custom_call.1} parent=1 // pred_region
      %61 = dma.done [#allocation10], 1536
    $region33: #{tpu_custom_call.1} parent=1 // pred_fallthru
      _
    %p62 = scmp.eq.s32.totalorder 0, 0
    // Predicated region
    $region34: #{tpu_custom_call.1} parent=1 // pred_check
      %p63 = pneg %p62
    $region35: #{tpu_custom_call.1} parent=1 // pred_check_branch
      %65 = sbr.rel (%p63) target = $region37
    $region36: #{tpu_custom_call.1} parent=1 // pred_region
      %vm66 = vcmask 261120
      %67 = vst.msk [vmem:[#allocation2] sm:$0xff] %vm66, 0.0
    $region37: #{tpu_custom_call.1} parent=1 // pred_fallthru
      _
    %v68 = vld [vmem:[#allocation6] sm:$0xff]
    %v69 = vld [vmem:[#allocation6 + $0x8] sm:$0xff]
    %v70 = vld [vmem:[#allocation6 + $0x10] sm:$0xff]
    %v71 = vld [vmem:[#allocation6 + $0x18] sm:$0xff]
    %v72 = vld [vmem:[#allocation9] sm:$0xff]
    %v73 = vld [vmem:[#allocation9 + $0x8] sm:$0xff]
    %v74 = vld [vmem:[%s3] sm:$0x1]
    %v76 = vlaneseq
    %v77 = vshrl.u32 %v76, 7
    %v78 = vsub.s32 0, %v77
    %v79 = vrot.slane %v74, %v78
    %vm81 = vcmask 130048
    %v83 = vsel %vm81, %v68, 0
    %v86 = vsel %vm81, %v69, 0
    %v89 = vsel %vm81, %v70, 0
    %v92 = vsel %vm81, %v71, 0
    %94 = vmatprep.subr.mxu0 0.0
    %95 = vmatpush1.msra.mxu0 0.0
    %96 = vmatprep.subr.mxu0 0.0
    %97 = vmatpush1.msra.mxu0 0.0
    %98 = vmatprep.subr.mxu0 0.0
    %99 = vmatpush1.msra.mxu0 0.0
    %100 = vmatprep.subr.mxu0 0.0
    %101 = vmatpush1.msra.mxu0 0.0
    %102 = vmatprep.subr.mxu0 0.0
    %103 = vmatpush1.msra.mxu0 0.0
    %104 = vmatprep.subr.mxu0 0.0
    %105 = vmatpush1.msra.mxu0 0.0
    %106 = vmatprep.subr.mxu0 0.0
    %107 = vmatpush1.msra.mxu0 0.0
    %108 = vmatprep.subr.mxu0 0.0
    %109 = vmatpush1.msra.mxu0 0.0
    %110 = vmatprep.subr.mxu0 0.0
    %111 = vmatpush1.msra.mxu0 0.0
    %112 = vmatprep.subr.mxu0 0.0
    %113 = vmatpush1.msra.mxu0 0.0
    %114 = vmatprep.subr.mxu0 0.0
    %115 = vmatpush1.msra.mxu0 0.0
    %116 = vmatprep.subr.mxu0 0.0
    %117 = vmatpush1.msra.mxu0 0.0
    %118 = vmatprep.subr.mxu0 0.0
    %119 = vmatpush1.msra.mxu0 0.0
    %120 = vmatprep.subr.mxu0 0.0
    %121 = vmatpush1.msra.mxu0 0.0
    %122 = vmatprep.subr.mxu0 0.0
    %123 = vmatpush1.msra.mxu0 %v73
    %124 = vmatprep.subr.mxu0 0.0
    %125 = vmatpush1.msra.mxu0 %v72
    %126 = vmatprep.subr.mxu0 0.0
    %127 = vmatpush2.msra.mxu0 0.0
    %128 = vmatprep.subr.mxu0 0.0
    %129 = vmatpush2.msra.mxu0 0.0
    %130 = vmatprep.subr.mxu0 0.0
    %131 = vmatpush2.msra.mxu0 0.0
    %132 = vmatprep.subr.mxu0 0.0
    %133 = vmatpush2.msra.mxu0 0.0
    %134 = vmatprep.subr.mxu0 0.0
    %135 = vmatpush2.msra.mxu0 0.0
    %136 = vmatprep.subr.mxu0 0.0
    %137 = vmatpush2.msra.mxu0 0.0
    %138 = vmatprep.subr.mxu0 0.0
    %139 = vmatpush2.msra.mxu0 0.0
    %140 = vmatprep.subr.mxu0 0.0
    %141 = vmatpush2.msra.mxu0 0.0
    %142 = vmatprep.subr.mxu0 0.0
    %143 = vmatpush2.msra.mxu0 0.0
    %144 = vmatprep.subr.mxu0 0.0
    %145 = vmatpush2.msra.mxu0 0.0
    %146 = vmatprep.subr.mxu0 0.0
    %147 = vmatpush2.msra.mxu0 0.0
    %148 = vmatprep.subr.mxu0 0.0
    %149 = vmatpush2.msra.mxu0 0.0
    %150 = vmatprep.subr.mxu0 0.0
    %151 = vmatpush2.msra.mxu0 0.0
    %152 = vmatprep.subr.mxu0 0.0
    %153 = vmatpush2.msra.mxu0 0.0
    %154 = vmatprep.subr.mxu0 0.0
    %155 = vmatpush2.msra.mxu0 0.0
    %156 = vmatprep.subr.mxu0 0.0
    %157 = vmatpush2.msra.mxu0 0.0
    %158 = vmatprep.mubr.f32.mxu0 0.0
    %159 = vmatmul.mubr.f32.gmra.mxu0 %v83
    %v160 = vpop.f32.mrf.mxu0
    %v161 = vadd.f32 %v79, %v160
    %v162 = vpop.f32.mrf.mxu0
    %163 = vmatprep.mubr.f32.mxu0 0.0
    %164 = vmatmul.mubr.f32.gmra.mxu0 %v86
    %v165 = vpop.f32.mrf.mxu0
    %v166 = vadd.f32 %v79, %v165
    %v167 = vpop.f32.mrf.mxu0
    %168 = vmatprep.mubr.f32.mxu0 0.0
    %169 = vmatmul.mubr.f32.gmra.mxu0 %v89
    %v170 = vpop.f32.mrf.mxu0
    %v171 = vadd.f32 %v79, %v170
    %v172 = vpop.f32.mrf.mxu0
    %173 = vmatprep.mubr.f32.mxu0 0.0
    %174 = vmatmul.mubr.f32.gmra.mxu0 %v92
    %v175 = vpop.f32.mrf.mxu0
    %v176 = vadd.f32 %v79, %v175
    %v177 = vpop.f32.mrf.mxu0
    %178 = vdwg.mxu0
    %vm179 = vcmask 261120
    %180 = vst.msk [vmem:[#allocation3] sm:$0xff] %vm179, %v161
    %181 = vst.msk [vmem:[#allocation3 + $0x8] sm:$0xff] %vm179, %v166
    %182 = vst.msk [vmem:[#allocation3 + $0x10] sm:$0xff] %vm179, %v171
    %183 = vst.msk [vmem:[#allocation3 + $0x18] sm:$0xff] %vm179, %v176
    %s184 = scalar_lea.vmem [#allocation9], 16
    %v185 = vld [vmem:[%s184] sm:$0xff]
    %v186 = vld [vmem:[%s184 + $0x8] sm:$0xff]
    %s187 = scalar_lea.vmem %s3, 1
    %v188 = vld [vmem:[%s187] sm:$0x1]
    %v190 = vlaneseq
    %v191 = vshrl.u32 %v190, 7
    %v192 = vsub.s32 0, %v191
    %v193 = vrot.slane %v188, %v192
    %195 = vmatprep.subr.mxu0 0.0
    %196 = vmatpush1.msra.mxu0 0.0
    %197 = vmatprep.subr.mxu0 0.0
    %198 = vmatpush1.msra.mxu0 0.0
    %199 = vmatprep.subr.mxu0 0.0
    %200 = vmatpush1.msra.mxu0 0.0
    %201 = vmatprep.subr.mxu0 0.0
    %202 = vmatpush1.msra.mxu0 0.0
    %203 = vmatprep.subr.mxu0 0.0
    %204 = vmatpush1.msra.mxu0 0.0
    %205 = vmatprep.subr.mxu0 0.0
    %206 = vmatpush1.msra.mxu0 0.0
    %207 = vmatprep.subr.mxu0 0.0
    %208 = vmatpush1.msra.mxu0 0.0
    %209 = vmatprep.subr.mxu0 0.0
    %210 = vmatpush1.msra.mxu0 0.0
    %211 = vmatprep.subr.mxu0 0.0
    %212 = vmatpush1.msra.mxu0 0.0
    %213 = vmatprep.subr.mxu0 0.0
    %214 = vmatpush1.msra.mxu0 0.0
    %215 = vmatprep.subr.mxu0 0.0
    %216 = vmatpush1.msra.mxu0 0.0
    %217 = vmatprep.subr.mxu0 0.0
    %218 = vmatpush1.msra.mxu0 0.0
    %219 = vmatprep.subr.mxu0 0.0
    %220 = vmatpush1.msra.mxu0 0.0
    %221 = vmatprep.subr.mxu0 0.0
    %222 = vmatpush1.msra.mxu0 0.0
    %223 = vmatprep.subr.mxu0 0.0
    %224 = vmatpush1.msra.mxu0 %v186
    %225 = vmatprep.subr.mxu0 0.0
    %226 = vmatpush1.msra.mxu0 %v185
    %227 = vmatprep.subr.mxu0 0.0
    %228 = vmatpush2.msra.mxu0 0.0
    %229 = vmatprep.subr.mxu0 0.0
    %230 = vmatpush2.msra.mxu0 0.0
    %231 = vmatprep.subr.mxu0 0.0
    %232 = vmatpush2.msra.mxu0 0.0
    %233 = vmatprep.subr.mxu0 0.0
    %234 = vmatpush2.msra.mxu0 0.0
    %235 = vmatprep.subr.mxu0 0.0
    %236 = vmatpush2.msra.mxu0 0.0
    %237 = vmatprep.subr.mxu0 0.0
    %238 = vmatpush2.msra.mxu0 0.0
    %239 = vmatprep.subr.mxu0 0.0
    %240 = vmatpush2.msra.mxu0 0.0
    %241 = vmatprep.subr.mxu0 0.0
    %242 = vmatpush2.msra.mxu0 0.0
    %243 = vmatprep.subr.mxu0 0.0
    %244 = vmatpush2.msra.mxu0 0.0
    %245 = vmatprep.subr.mxu0 0.0
    %246 = vmatpush2.msra.mxu0 0.0
    %247 = vmatprep.subr.mxu0 0.0
    %248 = vmatpush2.msra.mxu0 0.0
    %249 = vmatprep.subr.mxu0 0.0
    %250 = vmatpush2.msra.mxu0 0.0
    %251 = vmatprep.subr.mxu0 0.0
    %252 = vmatpush2.msra.mxu0 0.0
    %253 = vmatprep.subr.mxu0 0.0
    %254 = vmatpush2.msra.mxu0 0.0
    %255 = vmatprep.subr.mxu0 0.0
    %256 = vmatpush2.msra.mxu0 0.0
    %257 = vmatprep.subr.mxu0 0.0
    %258 = vmatpush2.msra.mxu0 0.0
    %259 = vmatprep.mubr.f32.mxu0 0.0
    %260 = vmatmul.mubr.f32.gmra.mxu0 %v83
    %v261 = vpop.f32.mrf.mxu0
    %v262 = vadd.f32 %v193, %v261
    %v263 = vpop.f32.mrf.mxu0
    %264 = vmatprep.mubr.f32.mxu0 0.0
    %265 = vmatmul.mubr.f32.gmra.mxu0 %v86
    %v266 = vpop.f32.mrf.mxu0
    %v267 = vadd.f32 %v193, %v266
    %v268 = vpop.f32.mrf.mxu0
    %269 = vmatprep.mubr.f32.mxu0 0.0
    %270 = vmatmul.mubr.f32.gmra.mxu0 %v89
    %v271 = vpop.f32.mrf.mxu0
    %v272 = vadd.f32 %v193, %v271
    %v273 = vpop.f32.mrf.mxu0
    %274 = vmatprep.mubr.f32.mxu0 0.0
    %275 = vmatmul.mubr.f32.gmra.mxu0 %v92
    %v276 = vpop.f32.mrf.mxu0
    %v277 = vadd.f32 %v193, %v276
    %v278 = vpop.f32.mrf.mxu0
    %279 = vdwg.mxu0
    %280 = vst.msk [vmem:[#allocation4] sm:$0xff] %vm179, %v262
    %281 = vst.msk [vmem:[#allocation4 + $0x8] sm:$0xff] %vm179, %v267
    %282 = vst.msk [vmem:[#allocation4 + $0x10] sm:$0xff] %vm179, %v272
    %283 = vst.msk [vmem:[#allocation4 + $0x18] sm:$0xff] %vm179, %v277
    %s284 = scalar_lea.vmem [#allocation9], 32
    %v285 = vld [vmem:[%s284] sm:$0xff]
    %v286 = vld [vmem:[%s284 + $0x8] sm:$0xff]
    %s287 = scalar_lea.vmem %s3, 2
    %v288 = vld [vmem:[%s287] sm:$0x1]
    %v290 = vlaneseq
    %v291 = vshrl.u32 %v290, 7
    %v292 = vsub.s32 0, %v291
    %v293 = vrot.slane %v288, %v292
    %295 = vmatprep.subr.mxu0 0.0
    %296 = vmatpush1.msra.mxu0 0.0
    %297 = vmatprep.subr.mxu0 0.0
    %298 = vmatpush1.msra.mxu0 0.0
    %299 = vmatprep.subr.mxu0 0.0
    %300 = vmatpush1.msra.mxu0 0.0
    %301 = vmatprep.subr.mxu0 0.0
    %302 = vmatpush1.msra.mxu0 0.0
    %303 = vmatprep.subr.mxu0 0.0
    %304 = vmatpush1.msra.mxu0 0.0
    %305 = vmatprep.subr.mxu0 0.0
    %306 = vmatpush1.msra.mxu0 0.0
    %307 = vmatprep.subr.mxu0 0.0
    %308 = vmatpush1.msra.mxu0 0.0
    %309 = vmatprep.subr.mxu0 0.0
    %310 = vmatpush1.msra.mxu0 0.0
    %311 = vmatprep.subr.mxu0 0.0
    %312 = vmatpush1.msra.mxu0 0.0
    %313 = vmatprep.subr.mxu0 0.0
    %314 = vmatpush1.msra.mxu0 0.0
    %315 = vmatprep.subr.mxu0 0.0
    %316 = vmatpush1.msra.mxu0 0.0
    %317 = vmatprep.subr.mxu0 0.0
    %318 = vmatpush1.msra.mxu0 0.0
    %319 = vmatprep.subr.mxu0 0.0
    %320 = vmatpush1.msra.mxu0 0.0
    %321 = vmatprep.subr.mxu0 0.0
    %322 = vmatpush1.msra.mxu0 0.0
    %323 = vmatprep.subr.mxu0 0.0
    %324 = vmatpush1.msra.mxu0 %v286
    %325 = vmatprep.subr.mxu0 0.0
    %326 = vmatpush1.msra.mxu0 %v285
    %327 = vmatprep.subr.mxu0 0.0
    %328 = vmatpush2.msra.mxu0 0.0
    %329 = vmatprep.subr.mxu0 0.0
    %330 = vmatpush2.msra.mxu0 0.0
    %331 = vmatprep.subr.mxu0 0.0
    %332 = vmatpush2.msra.mxu0 0.0
    %333 = vmatprep.subr.mxu0 0.0
    %334 = vmatpush2.msra.mxu0 0.0
    %335 = vmatprep.subr.mxu0 0.0
    %336 = vmatpush2.msra.mxu0 0.0
    %337 = vmatprep.subr.mxu0 0.0
    %338 = vmatpush2.msra.mxu0 0.0
    %339 = vmatprep.subr.mxu0 0.0
    %340 = vmatpush2.msra.mxu0 0.0
    %341 = vmatprep.subr.mxu0 0.0
    %342 = vmatpush2.msra.mxu0 0.0
    %343 = vmatprep.subr.mxu0 0.0
    %344 = vmatpush2.msra.mxu0 0.0
    %345 = vmatprep.subr.mxu0 0.0
    %346 = vmatpush2.msra.mxu0 0.0
    %347 = vmatprep.subr.mxu0 0.0
    %348 = vmatpush2.msra.mxu0 0.0
    %349 = vmatprep.subr.mxu0 0.0
    %350 = vmatpush2.msra.mxu0 0.0
    %351 = vmatprep.subr.mxu0 0.0
    %352 = vmatpush2.msra.mxu0 0.0
    %353 = vmatprep.subr.mxu0 0.0
    %354 = vmatpush2.msra.mxu0 0.0
    %355 = vmatprep.subr.mxu0 0.0
    %356 = vmatpush2.msra.mxu0 0.0
    %357 = vmatprep.subr.mxu0 0.0
    %358 = vmatpush2.msra.mxu0 0.0
    %359 = vmatprep.mubr.f32.mxu0 0.0
    %360 = vmatmul.mubr.f32.gmra.mxu0 %v83
    %v361 = vpop.f32.mrf.mxu0
    %v362 = vadd.f32 %v293, %v361
    %v363 = vpop.f32.mrf.mxu0
    %364 = vmatprep.mubr.f32.mxu0 0.0
    %365 = vmatmul.mubr.f32.gmra.mxu0 %v86
    %v366 = vpop.f32.mrf.mxu0
    %v367 = vadd.f32 %v293, %v366
    %v368 = vpop.f32.mrf.mxu0
    %369 = vmatprep.mubr.f32.mxu0 0.0
    %370 = vmatmul.mubr.f32.gmra.mxu0 %v89
    %v371 = vpop.f32.mrf.mxu0
    %v372 = vadd.f32 %v293, %v371
    %v373 = vpop.f32.mrf.mxu0
    %374 = vmatprep.mubr.f32.mxu0 0.0
    %375 = vmatmul.mubr.f32.gmra.mxu0 %v92
    %v376 = vpop.f32.mrf.mxu0
    %v377 = vadd.f32 %v293, %v376
    %v378 = vpop.f32.mrf.mxu0
    %379 = vdwg.mxu0
    %380 = vst.msk [vmem:[#allocation5] sm:$0xff] %vm179, %v362
    %381 = vst.msk [vmem:[#allocation5 + $0x8] sm:$0xff] %vm179, %v367
    %382 = vst.msk [vmem:[#allocation5 + $0x10] sm:$0xff] %vm179, %v372
    %383 = vst.msk [vmem:[#allocation5 + $0x18] sm:$0xff] %vm179, %v377
    %v384 = vld [vmem:[#allocation11] sm:$0xff]
    %v385 = vld [vmem:[#allocation11 + $0x8] sm:$0xff]
    %v386 = vld [vmem:[#allocation11 + $0x10] sm:$0xff]
    %v387 = vld [vmem:[#allocation11 + $0x18] sm:$0xff]
    %s388 = scalar_lea.vmem [#allocation11], 32
    %v389 = vld [vmem:[%s388] sm:$0xff]
    %v390 = vld [vmem:[%s388 + $0x8] sm:$0xff]
    %v391 = vld [vmem:[%s388 + $0x10] sm:$0xff]
    %v392 = vld [vmem:[%s388 + $0x18] sm:$0xff]
    %s393 = scalar_lea.vmem [#allocation11], 64
    %v394 = vld [vmem:[%s393] sm:$0xff]
    %v395 = vld [vmem:[%s393 + $0x8] sm:$0xff]
    %v396 = vld [vmem:[%s393 + $0x10] sm:$0xff]
    %v397 = vld [vmem:[%s393 + $0x18] sm:$0xff]
    %v398 = vld [vmem:[%s4] sm:$0x1]
    %v400 = vlaneseq
    %v401 = vshrl.u32 %v400, 7
    %v402 = vsub.s32 0, %v401
    %v403 = vrot.slane %v398, %v402
    %v405 = vld [vmem:[#allocation2] sm:$0xff]
    %v406 = vld [vmem:[#allocation3] sm:$0xff]
    %v407 = vld [vmem:[#allocation4] sm:$0xff]
    %v408 = vld [vmem:[#allocation5] sm:$0xff]
    %v410 = vsel %vm179, %v405, 0
    %412 = vmatprep.subr.mxu0 0.0
    %413 = vmatpush1.msra.mxu0 0.0
    %414 = vmatprep.subr.mxu0 0.0
    %415 = vmatpush1.msra.mxu0 0.0
    %416 = vmatprep.subr.mxu0 0.0
    %417 = vmatpush1.msra.mxu0 0.0
    %418 = vmatprep.subr.mxu0 0.0
    %419 = vmatpush1.msra.mxu0 0.0
    %420 = vmatprep.subr.mxu0 0.0
    %421 = vmatpush1.msra.mxu0 0.0
    %422 = vmatprep.subr.mxu0 0.0
    %423 = vmatpush1.msra.mxu0 0.0
    %424 = vmatprep.subr.mxu0 0.0
    %425 = vmatpush1.msra.mxu0 0.0
    %426 = vmatprep.subr.mxu0 0.0
    %427 = vmatpush1.msra.mxu0 0.0
    %428 = vmatprep.subr.mxu0 0.0
    %429 = vmatpush1.msra.mxu0 0.0
    %430 = vmatprep.subr.mxu0 0.0
    %431 = vmatpush1.msra.mxu0 0.0
    %432 = vmatprep.subr.mxu0 0.0
    %433 = vmatpush1.msra.mxu0 0.0
    %434 = vmatprep.subr.mxu0 0.0
    %435 = vmatpush1.msra.mxu0 0.0
    %436 = vmatprep.subr.mxu0 0.0
    %437 = vmatpush1.msra.mxu0 %v387
    %438 = vmatprep.subr.mxu0 0.0
    %439 = vmatpush1.msra.mxu0 %v386
    %440 = vmatprep.subr.mxu0 0.0
    %441 = vmatpush1.msra.mxu0 %v385
    %442 = vmatprep.subr.mxu0 0.0
    %443 = vmatpush1.msra.mxu0 %v384
    %444 = vmatprep.subr.mxu0 0.0
    %445 = vmatpush2.msra.mxu0 0.0
    %446 = vmatprep.subr.mxu0 0.0
    %447 = vmatpush2.msra.mxu0 0.0
    %448 = vmatprep.subr.mxu0 0.0
    %449 = vmatpush2.msra.mxu0 0.0
    %450 = vmatprep.subr.mxu0 0.0
    %451 = vmatpush2.msra.mxu0 0.0
    %452 = vmatprep.subr.mxu0 0.0
    %453 = vmatpush2.msra.mxu0 0.0
    %454 = vmatprep.subr.mxu0 0.0
    %455 = vmatpush2.msra.mxu0 0.0
    %456 = vmatprep.subr.mxu0 0.0
    %457 = vmatpush2.msra.mxu0 0.0
    %458 = vmatprep.subr.mxu0 0.0
    %459 = vmatpush2.msra.mxu0 0.0
    %460 = vmatprep.subr.mxu0 0.0
    %461 = vmatpush2.msra.mxu0 0.0
    %462 = vmatprep.subr.mxu0 0.0
    %463 = vmatpush2.msra.mxu0 0.0
    %464 = vmatprep.subr.mxu0 0.0
    %465 = vmatpush2.msra.mxu0 0.0
    %466 = vmatprep.subr.mxu0 0.0
    %467 = vmatpush2.msra.mxu0 0.0
    %468 = vmatprep.subr.mxu0 0.0
    %469 = vmatpush2.msra.mxu0 0.0
    %470 = vmatprep.subr.mxu0 0.0
    %471 = vmatpush2.msra.mxu0 0.0
    %472 = vmatprep.subr.mxu0 0.0
    %473 = vmatpush2.msra.mxu0 0.0
    %474 = vmatprep.subr.mxu0 0.0
    %475 = vmatpush2.msra.mxu0 0.0
    %476 = vmatprep.mubr.f32.mxu0 0.0
    %477 = vmatmul.mubr.f32.gmra.mxu0 %v410
    %v478 = vpop.f32.mrf.mxu0
    %v479 = vadd.f32 0.0, %v478
    %v480 = vpop.f32.mrf.mxu0
    %481 = vdwg.mxu0
    %482 = vmatprep.subr.mxu0 0.0
    %483 = vmatpush1.msra.mxu0 0.0
    %484 = vmatprep.subr.mxu0 0.0
    %485 = vmatpush1.msra.mxu0 0.0
    %486 = vmatprep.subr.mxu0 0.0
    %487 = vmatpush1.msra.mxu0 0.0
    %488 = vmatprep.subr.mxu0 0.0
    %489 = vmatpush1.msra.mxu0 0.0
    %490 = vmatprep.subr.mxu0 0.0
    %491 = vmatpush1.msra.mxu0 0.0
    %492 = vmatprep.subr.mxu0 0.0
    %493 = vmatpush1.msra.mxu0 0.0
    %494 = vmatprep.subr.mxu0 0.0
    %495 = vmatpush1.msra.mxu0 0.0
    %496 = vmatprep.subr.mxu0 0.0
    %497 = vmatpush1.msra.mxu0 0.0
    %498 = vmatprep.subr.mxu0 0.0
    %499 = vmatpush1.msra.mxu0 0.0
    %500 = vmatprep.subr.mxu0 0.0
    %501 = vmatpush1.msra.mxu0 0.0
    %502 = vmatprep.subr.mxu0 0.0
    %503 = vmatpush1.msra.mxu0 0.0
    %504 = vmatprep.subr.mxu0 0.0
    %505 = vmatpush1.msra.mxu0 0.0
    %506 = vmatprep.subr.mxu0 0.0
    %507 = vmatpush1.msra.mxu0 %v392
    %508 = vmatprep.subr.mxu0 0.0
    %509 = vmatpush1.msra.mxu0 %v391
    %510 = vmatprep.subr.mxu0 0.0
    %511 = vmatpush1.msra.mxu0 %v390
    %512 = vmatprep.subr.mxu0 0.0
    %513 = vmatpush1.msra.mxu0 %v389
    %514 = vmatprep.subr.mxu0 0.0
    %515 = vmatpush2.msra.mxu0 0.0
    %516 = vmatprep.subr.mxu0 0.0
    %517 = vmatpush2.msra.mxu0 0.0
    %518 = vmatprep.subr.mxu0 0.0
    %519 = vmatpush2.msra.mxu0 0.0
    %520 = vmatprep.subr.mxu0 0.0
    %521 = vmatpush2.msra.mxu0 0.0
    %522 = vmatprep.subr.mxu0 0.0
    %523 = vmatpush2.msra.mxu0 0.0
    %524 = vmatprep.subr.mxu0 0.0
    %525 = vmatpush2.msra.mxu0 0.0
    %526 = vmatprep.subr.mxu0 0.0
    %527 = vmatpush2.msra.mxu0 0.0
    %528 = vmatprep.subr.mxu0 0.0
    %529 = vmatpush2.msra.mxu0 0.0
    %530 = vmatprep.subr.mxu0 0.0
    %531 = vmatpush2.msra.mxu0 0.0
    %532 = vmatprep.subr.mxu0 0.0
    %533 = vmatpush2.msra.mxu0 0.0
    %534 = vmatprep.subr.mxu0 0.0
    %535 = vmatpush2.msra.mxu0 0.0
    %536 = vmatprep.subr.mxu0 0.0
    %537 = vmatpush2.msra.mxu0 0.0
    %538 = vmatprep.subr.mxu0 0.0
    %539 = vmatpush2.msra.mxu0 0.0
    %540 = vmatprep.subr.mxu0 0.0
    %541 = vmatpush2.msra.mxu0 0.0
    %542 = vmatprep.subr.mxu0 0.0
    %543 = vmatpush2.msra.mxu0 0.0
    %544 = vmatprep.subr.mxu0 0.0
    %545 = vmatpush2.msra.mxu0 0.0
    %546 = vmatprep.mubr.f32.mxu0 0.0
    %547 = vmatmul.mubr.f32.gmra.mxu0 %v410
    %v548 = vpop.f32.mrf.mxu0
    %v549 = vadd.f32 0.0, %v548
    %v550 = vpop.f32.mrf.mxu0
    %551 = vdwg.mxu0
    %v552 = vadd.f32 %v406, %v479
    %v553 = vxor.u32 %v552, 2147483648
    %v554 = vmul.f32 %v553, 1.442695
    %v555 = vpow.pop %v554
    %v556 = vadd.f32 %v555, 1.0
    %v557 = vrcp.pop %v556
    %v558 = vmul.f32 1.0, %v557
    %v559 = vadd.f32 %v407, %v549
    %v560 = vxor.u32 %v559, 2147483648
    %v561 = vmul.f32 %v560, 1.442695
    %v562 = vpow.pop %v561
    %v563 = vadd.f32 %v562, 1.0
    %v564 = vrcp.pop %v563
    %v565 = vmul.f32 1.0, %v564
    %566 = vmatprep.subr.mxu0 0.0
    %567 = vmatpush1.msra.mxu0 0.0
    %568 = vmatprep.subr.mxu0 0.0
    %569 = vmatpush1.msra.mxu0 0.0
    %570 = vmatprep.subr.mxu0 0.0
    %571 = vmatpush1.msra.mxu0 0.0
    %572 = vmatprep.subr.mxu0 0.0
    %573 = vmatpush1.msra.mxu0 0.0
    %574 = vmatprep.subr.mxu0 0.0
    %575 = vmatpush1.msra.mxu0 0.0
    %576 = vmatprep.subr.mxu0 0.0
    %577 = vmatpush1.msra.mxu0 0.0
    %578 = vmatprep.subr.mxu0 0.0
    %579 = vmatpush1.msra.mxu0 0.0
    %580 = vmatprep.subr.mxu0 0.0
    %581 = vmatpush1.msra.mxu0 0.0
    %582 = vmatprep.subr.mxu0 0.0
    %583 = vmatpush1.msra.mxu0 0.0
    %584 = vmatprep.subr.mxu0 0.0
    %585 = vmatpush1.msra.mxu0 0.0
    %586 = vmatprep.subr.mxu0 0.0
    %587 = vmatpush1.msra.mxu0 0.0
    %588 = vmatprep.subr.mxu0 0.0
    %589 = vmatpush1.msra.mxu0 0.0
    %590 = vmatprep.subr.mxu0 0.0
    %591 = vmatpush1.msra.mxu0 %v397
    %592 = vmatprep.subr.mxu0 0.0
    %593 = vmatpush1.msra.mxu0 %v396
    %594 = vmatprep.subr.mxu0 0.0
    %595 = vmatpush1.msra.mxu0 %v395
    %596 = vmatprep.subr.mxu0 0.0
    %597 = vmatpush1.msra.mxu0 %v394
    %598 = vmatprep.subr.mxu0 0.0
    %599 = vmatpush2.msra.mxu0 0.0
    %600 = vmatprep.subr.mxu0 0.0
    %601 = vmatpush2.msra.mxu0 0.0
    %602 = vmatprep.subr.mxu0 0.0
    %603 = vmatpush2.msra.mxu0 0.0
    %604 = vmatprep.subr.mxu0 0.0
    %605 = vmatpush2.msra.mxu0 0.0
    %606 = vmatprep.subr.mxu0 0.0
    %607 = vmatpush2.msra.mxu0 0.0
    %608 = vmatprep.subr.mxu0 0.0
    %609 = vmatpush2.msra.mxu0 0.0
    %610 = vmatprep.subr.mxu0 0.0
    %611 = vmatpush2.msra.mxu0 0.0
    %612 = vmatprep.subr.mxu0 0.0
    %613 = vmatpush2.msra.mxu0 0.0
    %614 = vmatprep.subr.mxu0 0.0
    %615 = vmatpush2.msra.mxu0 0.0
    %616 = vmatprep.subr.mxu0 0.0
    %617 = vmatpush2.msra.mxu0 0.0
    %618 = vmatprep.subr.mxu0 0.0
    %619 = vmatpush2.msra.mxu0 0.0
    %620 = vmatprep.subr.mxu0 0.0
    %621 = vmatpush2.msra.mxu0 0.0
    %622 = vmatprep.subr.mxu0 0.0
    %623 = vmatpush2.msra.mxu0 0.0
    %624 = vmatprep.subr.mxu0 0.0
    %625 = vmatpush2.msra.mxu0 0.0
    %626 = vmatprep.subr.mxu0 0.0
    %627 = vmatpush2.msra.mxu0 0.0
    %628 = vmatprep.subr.mxu0 0.0
    %629 = vmatpush2.msra.mxu0 0.0
    %630 = vmatprep.mubr.f32.mxu0 0.0
    %631 = vmatmul.mubr.f32.gmra.mxu0 %v410
    %v632 = vpop.f32.mrf.mxu0
    %v633 = vadd.f32 %v403, %v632
    %v634 = vpop.f32.mrf.mxu0
    %635 = vdwg.mxu0
    %v636 = vmul.f32 %v558, %v633
    %v637 = vadd.f32 %v408, %v636
    %v638 = vtanh.pop %v637
    %v639 = vsub.f32 %v405, %v638
    %v640 = vmul.f32 %v565, %v639
    %v641 = vadd.f32 %v638, %v640
    %642 = vst.msk [vmem:[#allocation12] sm:$0xff] %vm179, %v641
    %s643 = scalar_lea.vmem [#allocation3], 8
    %v644 = vld [vmem:[%s643] sm:$0xff]
    %s645 = scalar_lea.vmem [#allocation4], 8
    %v646 = vld [vmem:[%s645] sm:$0xff]
    %s647 = scalar_lea.vmem [#allocation5], 8
    %v648 = vld [vmem:[%s647] sm:$0xff]
    %v650 = vsel %vm179, %v641, 0
    %652 = vmatprep.subr.mxu0 0.0
    %653 = vmatpush1.msra.mxu0 0.0
    %654 = vmatprep.subr.mxu0 0.0
    %655 = vmatpush1.msra.mxu0 0.0
    %656 = vmatprep.subr.mxu0 0.0
    %657 = vmatpush1.msra.mxu0 0.0
    %658 = vmatprep.subr.mxu0 0.0
    %659 = vmatpush1.msra.mxu0 0.0
    %660 = vmatprep.subr.mxu0 0.0
    %661 = vmatpush1.msra.mxu0 0.0
    %662 = vmatprep.subr.mxu0 0.0
    %663 = vmatpush1.msra.mxu0 0.0
    %664 = vmatprep.subr.mxu0 0.0
    %665 = vmatpush1.msra.mxu0 0.0
    %666 = vmatprep.subr.mxu0 0.0
    %667 = vmatpush1.msra.mxu0 0.0
    %668 = vmatprep.subr.mxu0 0.0
    %669 = vmatpush1.msra.mxu0 0.0
    %670 = vmatprep.subr.mxu0 0.0
    %671 = vmatpush1.msra.mxu0 0.0
    %672 = vmatprep.subr.mxu0 0.0
    %673 = vmatpush1.msra.mxu0 0.0
    %674 = vmatprep.subr.mxu0 0.0
    %675 = vmatpush1.msra.mxu0 0.0
    %676 = vmatprep.subr.mxu0 0.0
    %677 = vmatpush1.msra.mxu0 %v387
    %678 = vmatprep.subr.mxu0 0.0
    %679 = vmatpush1.msra.mxu0 %v386
    %680 = vmatprep.subr.mxu0 0.0
    %681 = vmatpush1.msra.mxu0 %v385
    %682 = vmatprep.subr.mxu0 0.0
    %683 = vmatpush1.msra.mxu0 %v384
    %684 = vmatprep.subr.mxu0 0.0
    %685 = vmatpush2.msra.mxu0 0.0
    %686 = vmatprep.subr.mxu0 0.0
    %687 = vmatpush2.msra.mxu0 0.0
    %688 = vmatprep.subr.mxu0 0.0
    %689 = vmatpush2.msra.mxu0 0.0
    %690 = vmatprep.subr.mxu0 0.0
    %691 = vmatpush2.msra.mxu0 0.0
    %692 = vmatprep.subr.mxu0 0.0
    %693 = vmatpush2.msra.mxu0 0.0
    %694 = vmatprep.subr.mxu0 0.0
    %695 = vmatpush2.msra.mxu0 0.0
    %696 = vmatprep.subr.mxu0 0.0
    %697 = vmatpush2.msra.mxu0 0.0
    %698 = vmatprep.subr.mxu0 0.0
    %699 = vmatpush2.msra.mxu0 0.0
    %700 = vmatprep.subr.mxu0 0.0
    %701 = vmatpush2.msra.mxu0 0.0
    %702 = vmatprep.subr.mxu0 0.0
    %703 = vmatpush2.msra.mxu0 0.0
    %704 = vmatprep.subr.mxu0 0.0
    %705 = vmatpush2.msra.mxu0 0.0
    %706 = vmatprep.subr.mxu0 0.0
    %707 = vmatpush2.msra.mxu0 0.0
    %708 = vmatprep.subr.mxu0 0.0
    %709 = vmatpush2.msra.mxu0 0.0
    %710 = vmatprep.subr.mxu0 0.0
    %711 = vmatpush2.msra.mxu0 0.0
    %712 = vmatprep.subr.mxu0 0.0
    %713 = vmatpush2.msra.mxu0 0.0
    %714 = vmatprep.subr.mxu0 0.0
    %715 = vmatpush2.msra.mxu0 0.0
    %716 = vmatprep.mubr.f32.mxu0 0.0
    %717 = vmatmul.mubr.f32.gmra.mxu0 %v650
    %v718 = vpop.f32.mrf.mxu0
    %v719 = vadd.f32 0.0, %v718
    %v720 = vpop.f32.mrf.mxu0
    %721 = vdwg.mxu0
    %722 = vmatprep.subr.mxu0 0.0
    %723 = vmatpush1.msra.mxu0 0.0
    %724 = vmatprep.subr.mxu0 0.0
    %725 = vmatpush1.msra.mxu0 0.0
    %726 = vmatprep.subr.mxu0 0.0
    %727 = vmatpush1.msra.mxu0 0.0
    %728 = vmatprep.subr.mxu0 0.0
    %729 = vmatpush1.msra.mxu0 0.0
    %730 = vmatprep.subr.mxu0 0.0
    %731 = vmatpush1.msra.mxu0 0.0
    %732 = vmatprep.subr.mxu0 0.0
    %733 = vmatpush1.msra.mxu0 0.0
    %734 = vmatprep.subr.mxu0 0.0
    %735 = vmatpush1.msra.mxu0 0.0
    %736 = vmatprep.subr.mxu0 0.0
    %737 = vmatpush1.msra.mxu0 0.0
    %738 = vmatprep.subr.mxu0 0.0
    %739 = vmatpush1.msra.mxu0 0.0
    %740 = vmatprep.subr.mxu0 0.0
    %741 = vmatpush1.msra.mxu0 0.0
    %742 = vmatprep.subr.mxu0 0.0
    %743 = vmatpush1.msra.mxu0 0.0
    %744 = vmatprep.subr.mxu0 0.0
    %745 = vmatpush1.msra.mxu0 0.0
    %746 = vmatprep.subr.mxu0 0.0
    %747 = vmatpush1.msra.mxu0 %v392
    %748 = vmatprep.subr.mxu0 0.0
    %749 = vmatpush1.msra.mxu0 %v391
    %750 = vmatprep.subr.mxu0 0.0
    %751 = vmatpush1.msra.mxu0 %v390
    %752 = vmatprep.subr.mxu0 0.0
    %753 = vmatpush1.msra.mxu0 %v389
    %754 = vmatprep.subr.mxu0 0.0
    %755 = vmatpush2.msra.mxu0 0.0
    %756 = vmatprep.subr.mxu0 0.0
    %757 = vmatpush2.msra.mxu0 0.0
    %758 = vmatprep.subr.mxu0 0.0
    %759 = vmatpush2.msra.mxu0 0.0
    %760 = vmatprep.subr.mxu0 0.0
    %761 = vmatpush2.msra.mxu0 0.0
    %762 = vmatprep.subr.mxu0 0.0
    %763 = vmatpush2.msra.mxu0 0.0
    %764 = vmatprep.subr.mxu0 0.0
    %765 = vmatpush2.msra.mxu0 0.0
    %766 = vmatprep.subr.mxu0 0.0
    %767 = vmatpush2.msra.mxu0 0.0
    %768 = vmatprep.subr.mxu0 0.0
    %769 = vmatpush2.msra.mxu0 0.0
    %770 = vmatprep.subr.mxu0 0.0
    %771 = vmatpush2.msra.mxu0 0.0
    %772 = vmatprep.subr.mxu0 0.0
    %773 = vmatpush2.msra.mxu0 0.0
    %774 = vmatprep.subr.mxu0 0.0
    %775 = vmatpush2.msra.mxu0 0.0
    %776 = vmatprep.subr.mxu0 0.0
    %777 = vmatpush2.msra.mxu0 0.0
    %778 = vmatprep.subr.mxu0 0.0
    %779 = vmatpush2.msra.mxu0 0.0
    %780 = vmatprep.subr.mxu0 0.0
    %781 = vmatpush2.msra.mxu0 0.0
    %782 = vmatprep.subr.mxu0 0.0
    %783 = vmatpush2.msra.mxu0 0.0
    %784 = vmatprep.subr.mxu0 0.0
    %785 = vmatpush2.msra.mxu0 0.0
    %786 = vmatprep.mubr.f32.mxu0 0.0
    %787 = vmatmul.mubr.f32.gmra.mxu0 %v650
    %v788 = vpop.f32.mrf.mxu0
    %v789 = vadd.f32 0.0, %v788
    %v790 = vpop.f32.mrf.mxu0
    %791 = vdwg.mxu0
    %v792 = vadd.f32 %v644, %v719
    %v793 = vxor.u32 %v792, 2147483648
    %v794 = vmul.f32 %v793, 1.442695
    %v795 = vpow.pop %v794
    %v796 = vadd.f32 %v795, 1.0
    %v797 = vrcp.pop %v796
    %v798 = vmul.f32 1.0, %v797
    %v799 = vadd.f32 %v646, %v789
    %v800 = vxor.u32 %v799, 2147483648
    %v801 = vmul.f32 %v800, 1.442695
    %v802 = vpow.pop %v801
    %v803 = vadd.f32 %v802, 1.0
    %v804 = vrcp.pop %v803
    %v805 = vmul.f32 1.0, %v804
    %806 = vmatprep.subr.mxu0 0.0
    %807 = vmatpush1.msra.mxu0 0.0
    %808 = vmatprep.subr.mxu0 0.0
    %809 = vmatpush1.msra.mxu0 0.0
    %810 = vmatprep.subr.mxu0 0.0
    %811 = vmatpush1.msra.mxu0 0.0
    %812 = vmatprep.subr.mxu0 0.0
    %813 = vmatpush1.msra.mxu0 0.0
    %814 = vmatprep.subr.mxu0 0.0
    %815 = vmatpush1.msra.mxu0 0.0
    %816 = vmatprep.subr.mxu0 0.0
    %817 = vmatpush1.msra.mxu0 0.0
    %818 = vmatprep.subr.mxu0 0.0
    %819 = vmatpush1.msra.mxu0 0.0
    %820 = vmatprep.subr.mxu0 0.0
    %821 = vmatpush1.msra.mxu0 0.0
    %822 = vmatprep.subr.mxu0 0.0
    %823 = vmatpush1.msra.mxu0 0.0
    %824 = vmatprep.subr.mxu0 0.0
    %825 = vmatpush1.msra.mxu0 0.0
    %826 = vmatprep.subr.mxu0 0.0
    %827 = vmatpush1.msra.mxu0 0.0
    %828 = vmatprep.subr.mxu0 0.0
    %829 = vmatpush1.msra.mxu0 0.0
    %830 = vmatprep.subr.mxu0 0.0
    %831 = vmatpush1.msra.mxu0 %v397
    %832 = vmatprep.subr.mxu0 0.0
    %833 = vmatpush1.msra.mxu0 %v396
    %834 = vmatprep.subr.mxu0 0.0
    %835 = vmatpush1.msra.mxu0 %v395
    %836 = vmatprep.subr.mxu0 0.0
    %837 = vmatpush1.msra.mxu0 %v394
    %838 = vmatprep.subr.mxu0 0.0
    %839 = vmatpush2.msra.mxu0 0.0
    %840 = vmatprep.subr.mxu0 0.0
    %841 = vmatpush2.msra.mxu0 0.0
    %842 = vmatprep.subr.mxu0 0.0
    %843 = vmatpush2.msra.mxu0 0.0
    %844 = vmatprep.subr.mxu0 0.0
    %845 = vmatpush2.msra.mxu0 0.0
    %846 = vmatprep.subr.mxu0 0.0
    %847 = vmatpush2.msra.mxu0 0.0
    %848 = vmatprep.subr.mxu0 0.0
    %849 = vmatpush2.msra.mxu0 0.0
    %850 = vmatprep.subr.mxu0 0.0
    %851 = vmatpush2.msra.mxu0 0.0
    %852 = vmatprep.subr.mxu0 0.0
    %853 = vmatpush2.msra.mxu0 0.0
    %854 = vmatprep.subr.mxu0 0.0
    %855 = vmatpush2.msra.mxu0 0.0
    %856 = vmatprep.subr.mxu0 0.0
    %857 = vmatpush2.msra.mxu0 0.0
    %858 = vmatprep.subr.mxu0 0.0
    %859 = vmatpush2.msra.mxu0 0.0
    %860 = vmatprep.subr.mxu0 0.0
    %861 = vmatpush2.msra.mxu0 0.0
    %862 = vmatprep.subr.mxu0 0.0
    %863 = vmatpush2.msra.mxu0 0.0
    %864 = vmatprep.subr.mxu0 0.0
    %865 = vmatpush2.msra.mxu0 0.0
    %866 = vmatprep.subr.mxu0 0.0
    %867 = vmatpush2.msra.mxu0 0.0
    %868 = vmatprep.subr.mxu0 0.0
    %869 = vmatpush2.msra.mxu0 0.0
    %870 = vmatprep.mubr.f32.mxu0 0.0
    %871 = vmatmul.mubr.f32.gmra.mxu0 %v650
    %v872 = vpop.f32.mrf.mxu0
    %v873 = vadd.f32 %v403, %v872
    %v874 = vpop.f32.mrf.mxu0
    %875 = vdwg.mxu0
    %v876 = vmul.f32 %v798, %v873
    %v877 = vadd.f32 %v648, %v876
    %v878 = vtanh.pop %v877
    %v879 = vsub.f32 %v641, %v878
    %v880 = vmul.f32 %v805, %v879
    %v881 = vadd.f32 %v878, %v880
    %s882 = scalar_lea.vmem [#allocation12], 8
    %883 = vst.msk [vmem:[%s882] sm:$0xff] %vm179, %v881
    %s884 = scalar_lea.vmem [#allocation3], 16
    %v885 = vld [vmem:[%s884] sm:$0xff]
    %s886 = scalar_lea.vmem [#allocation4], 16
    %v887 = vld [vmem:[%s886] sm:$0xff]
    %s888 = scalar_lea.vmem [#allocation5], 16
    %v889 = vld [vmem:[%s888] sm:$0xff]
    %v891 = vsel %vm179, %v881, 0
    %893 = vmatprep.subr.mxu0 0.0
    %894 = vmatpush1.msra.mxu0 0.0
    %895 = vmatprep.subr.mxu0 0.0
    %896 = vmatpush1.msra.mxu0 0.0
    %897 = vmatprep.subr.mxu0 0.0
    %898 = vmatpush1.msra.mxu0 0.0
    %899 = vmatprep.subr.mxu0 0.0
    %900 = vmatpush1.msra.mxu0 0.0
    %901 = vmatprep.subr.mxu0 0.0
    %902 = vmatpush1.msra.mxu0 0.0
    %903 = vmatprep.subr.mxu0 0.0
    %904 = vmatpush1.msra.mxu0 0.0
    %905 = vmatprep.subr.mxu0 0.0
    %906 = vmatpush1.msra.mxu0 0.0
    %907 = vmatprep.subr.mxu0 0.0
    %908 = vmatpush1.msra.mxu0 0.0
    %909 = vmatprep.subr.mxu0 0.0
    %910 = vmatpush1.msra.mxu0 0.0
    %911 = vmatprep.subr.mxu0 0.0
    %912 = vmatpush1.msra.mxu0 0.0
    %913 = vmatprep.subr.mxu0 0.0
    %914 = vmatpush1.msra.mxu0 0.0
    %915 = vmatprep.subr.mxu0 0.0
    %916 = vmatpush1.msra.mxu0 0.0
    %917 = vmatprep.subr.mxu0 0.0
    %918 = vmatpush1.msra.mxu0 %v387
    %919 = vmatprep.subr.mxu0 0.0
    %920 = vmatpush1.msra.mxu0 %v386
    %921 = vmatprep.subr.mxu0 0.0
    %922 = vmatpush1.msra.mxu0 %v385
    %923 = vmatprep.subr.mxu0 0.0
    %924 = vmatpush1.msra.mxu0 %v384
    %925 = vmatprep.subr.mxu0 0.0
    %926 = vmatpush2.msra.mxu0 0.0
    %927 = vmatprep.subr.mxu0 0.0
    %928 = vmatpush2.msra.mxu0 0.0
    %929 = vmatprep.subr.mxu0 0.0
    %930 = vmatpush2.msra.mxu0 0.0
    %931 = vmatprep.subr.mxu0 0.0
    %932 = vmatpush2.msra.mxu0 0.0
    %933 = vmatprep.subr.mxu0 0.0
    %934 = vmatpush2.msra.mxu0 0.0
    %935 = vmatprep.subr.mxu0 0.0
    %936 = vmatpush2.msra.mxu0 0.0
    %937 = vmatprep.subr.mxu0 0.0
    %938 = vmatpush2.msra.mxu0 0.0
    %939 = vmatprep.subr.mxu0 0.0
    %940 = vmatpush2.msra.mxu0 0.0
    %941 = vmatprep.subr.mxu0 0.0
    %942 = vmatpush2.msra.mxu0 0.0
    %943 = vmatprep.subr.mxu0 0.0
    %944 = vmatpush2.msra.mxu0 0.0
    %945 = vmatprep.subr.mxu0 0.0
    %946 = vmatpush2.msra.mxu0 0.0
    %947 = vmatprep.subr.mxu0 0.0
    %948 = vmatpush2.msra.mxu0 0.0
    %949 = vmatprep.subr.mxu0 0.0
    %950 = vmatpush2.msra.mxu0 0.0
    %951 = vmatprep.subr.mxu0 0.0
    %952 = vmatpush2.msra.mxu0 0.0
    %953 = vmatprep.subr.mxu0 0.0
    %954 = vmatpush2.msra.mxu0 0.0
    %955 = vmatprep.subr.mxu0 0.0
    %956 = vmatpush2.msra.mxu0 0.0
    %957 = vmatprep.mubr.f32.mxu0 0.0
    %958 = vmatmul.mubr.f32.gmra.mxu0 %v891
    %v959 = vpop.f32.mrf.mxu0
    %v960 = vadd.f32 0.0, %v959
    %v961 = vpop.f32.mrf.mxu0
    %962 = vdwg.mxu0
    %963 = vmatprep.subr.mxu0 0.0
    %964 = vmatpush1.msra.mxu0 0.0
    %965 = vmatprep.subr.mxu0 0.0
    %966 = vmatpush1.msra.mxu0 0.0
    %967 = vmatprep.subr.mxu0 0.0
    %968 = vmatpush1.msra.mxu0 0.0
    %969 = vmatprep.subr.mxu0 0.0
    %970 = vmatpush1.msra.mxu0 0.0
    %971 = vmatprep.subr.mxu0 0.0
    %972 = vmatpush1.msra.mxu0 0.0
    %973 = vmatprep.subr.mxu0 0.0
    %974 = vmatpush1.msra.mxu0 0.0
    %975 = vmatprep.subr.mxu0 0.0
    %976 = vmatpush1.msra.mxu0 0.0
    %977 = vmatprep.subr.mxu0 0.0
    %978 = vmatpush1.msra.mxu0 0.0
    %979 = vmatprep.subr.mxu0 0.0
    %980 = vmatpush1.msra.mxu0 0.0
    %981 = vmatprep.subr.mxu0 0.0
    %982 = vmatpush1.msra.mxu0 0.0
    %983 = vmatprep.subr.mxu0 0.0
    %984 = vmatpush1.msra.mxu0 0.0
    %985 = vmatprep.subr.mxu0 0.0
    %986 = vmatpush1.msra.mxu0 0.0
    %987 = vmatprep.subr.mxu0 0.0
    %988 = vmatpush1.msra.mxu0 %v392
    %989 = vmatprep.subr.mxu0 0.0
    %990 = vmatpush1.msra.mxu0 %v391
    %991 = vmatprep.subr.mxu0 0.0
    %992 = vmatpush1.msra.mxu0 %v390
    %993 = vmatprep.subr.mxu0 0.0
    %994 = vmatpush1.msra.mxu0 %v389
    %995 = vmatprep.subr.mxu0 0.0
    %996 = vmatpush2.msra.mxu0 0.0
    %997 = vmatprep.subr.mxu0 0.0
    %998 = vmatpush2.msra.mxu0 0.0
    %999 = vmatprep.subr.mxu0 0.0
    %1000 = vmatpush2.msra.mxu0 0.0
    %1001 = vmatprep.subr.mxu0 0.0
    %1002 = vmatpush2.msra.mxu0 0.0
    %1003 = vmatprep.subr.mxu0 0.0
    %1004 = vmatpush2.msra.mxu0 0.0
    %1005 = vmatprep.subr.mxu0 0.0
    %1006 = vmatpush2.msra.mxu0 0.0
    %1007 = vmatprep.subr.mxu0 0.0
    %1008 = vmatpush2.msra.mxu0 0.0
    %1009 = vmatprep.subr.mxu0 0.0
    %1010 = vmatpush2.msra.mxu0 0.0
    %1011 = vmatprep.subr.mxu0 0.0
    %1012 = vmatpush2.msra.mxu0 0.0
    %1013 = vmatprep.subr.mxu0 0.0
    %1014 = vmatpush2.msra.mxu0 0.0
    %1015 = vmatprep.subr.mxu0 0.0
    %1016 = vmatpush2.msra.mxu0 0.0
    %1017 = vmatprep.subr.mxu0 0.0
    %1018 = vmatpush2.msra.mxu0 0.0
    %1019 = vmatprep.subr.mxu0 0.0
    %1020 = vmatpush2.msra.mxu0 0.0
    %1021 = vmatprep.subr.mxu0 0.0
    %1022 = vmatpush2.msra.mxu0 0.0
    %1023 = vmatprep.subr.mxu0 0.0
    %1024 = vmatpush2.msra.mxu0 0.0
    %1025 = vmatprep.subr.mxu0 0.0
    %1026 = vmatpush2.msra.mxu0 0.0
    %1027 = vmatprep.mubr.f32.mxu0 0.0
    %1028 = vmatmul.mubr.f32.gmra.mxu0 %v891
    %v1029 = vpop.f32.mrf.mxu0
    %v1030 = vadd.f32 0.0, %v1029
    %v1031 = vpop.f32.mrf.mxu0
    %1032 = vdwg.mxu0
    %v1033 = vadd.f32 %v885, %v960
    %v1034 = vxor.u32 %v1033, 2147483648
    %v1035 = vmul.f32 %v1034, 1.442695
    %v1036 = vpow.pop %v1035
    %v1037 = vadd.f32 %v1036, 1.0
    %v1038 = vrcp.pop %v1037
    %v1039 = vmul.f32 1.0, %v1038
    %v1040 = vadd.f32 %v887, %v1030
    %v1041 = vxor.u32 %v1040, 2147483648
    %v1042 = vmul.f32 %v1041, 1.442695
    %v1043 = vpow.pop %v1042
    %v1044 = vadd.f32 %v1043, 1.0
    %v1045 = vrcp.pop %v1044
    %v1046 = vmul.f32 1.0, %v1045
    %1047 = vmatprep.subr.mxu0 0.0
    %1048 = vmatpush1.msra.mxu0 0.0
    %1049 = vmatprep.subr.mxu0 0.0
    %1050 = vmatpush1.msra.mxu0 0.0
    %1051 = vmatprep.subr.mxu0 0.0
    %1052 = vmatpush1.msra.mxu0 0.0
    %1053 = vmatprep.subr.mxu0 0.0
    %1054 = vmatpush1.msra.mxu0 0.0
    %1055 = vmatprep.subr.mxu0 0.0
    %1056 = vmatpush1.msra.mxu0 0.0
    %1057 = vmatprep.subr.mxu0 0.0
    %1058 = vmatpush1.msra.mxu0 0.0
    %1059 = vmatprep.subr.mxu0 0.0
    %1060 = vmatpush1.msra.mxu0 0.0
    %1061 = vmatprep.subr.mxu0 0.0
    %1062 = vmatpush1.msra.mxu0 0.0
    %1063 = vmatprep.subr.mxu0 0.0
    %1064 = vmatpush1.msra.mxu0 0.0
    %1065 = vmatprep.subr.mxu0 0.0
    %1066 = vmatpush1.msra.mxu0 0.0
    %1067 = vmatprep.subr.mxu0 0.0
    %1068 = vmatpush1.msra.mxu0 0.0
    %1069 = vmatprep.subr.mxu0 0.0
    %1070 = vmatpush1.msra.mxu0 0.0
    %1071 = vmatprep.subr.mxu0 0.0
    %1072 = vmatpush1.msra.mxu0 %v397
    %1073 = vmatprep.subr.mxu0 0.0
    %1074 = vmatpush1.msra.mxu0 %v396
    %1075 = vmatprep.subr.mxu0 0.0
    %1076 = vmatpush1.msra.mxu0 %v395
    %1077 = vmatprep.subr.mxu0 0.0
    %1078 = vmatpush1.msra.mxu0 %v394
    %1079 = vmatprep.subr.mxu0 0.0
    %1080 = vmatpush2.msra.mxu0 0.0
    %1081 = vmatprep.subr.mxu0 0.0
    %1082 = vmatpush2.msra.mxu0 0.0
    %1083 = vmatprep.subr.mxu0 0.0
    %1084 = vmatpush2.msra.mxu0 0.0
    %1085 = vmatprep.subr.mxu0 0.0
    %1086 = vmatpush2.msra.mxu0 0.0
    %1087 = vmatprep.subr.mxu0 0.0
    %1088 = vmatpush2.msra.mxu0 0.0
    %1089 = vmatprep.subr.mxu0 0.0
    %1090 = vmatpush2.msra.mxu0 0.0
    %1091 = vmatprep.subr.mxu0 0.0
    %1092 = vmatpush2.msra.mxu0 0.0
    %1093 = vmatprep.subr.mxu0 0.0
    %1094 = vmatpush2.msra.mxu0 0.0
    %1095 = vmatprep.subr.mxu0 0.0
    %1096 = vmatpush2.msra.mxu0 0.0
    %1097 = vmatprep.subr.mxu0 0.0
    %1098 = vmatpush2.msra.mxu0 0.0
    %1099 = vmatprep.subr.mxu0 0.0
    %1100 = vmatpush2.msra.mxu0 0.0
    %1101 = vmatprep.subr.mxu0 0.0
    %1102 = vmatpush2.msra.mxu0 0.0
    %1103 = vmatprep.subr.mxu0 0.0
    %1104 = vmatpush2.msra.mxu0 0.0
    %1105 = vmatprep.subr.mxu0 0.0
    %1106 = vmatpush2.msra.mxu0 0.0
    %1107 = vmatprep.subr.mxu0 0.0
    %1108 = vmatpush2.msra.mxu0 0.0
    %1109 = vmatprep.subr.mxu0 0.0
    %1110 = vmatpush2.msra.mxu0 0.0
    %1111 = vmatprep.mubr.f32.mxu0 0.0
    %1112 = vmatmul.mubr.f32.gmra.mxu0 %v891
    %v1113 = vpop.f32.mrf.mxu0
    %v1114 = vadd.f32 %v403, %v1113
    %v1115 = vpop.f32.mrf.mxu0
    %1116 = vdwg.mxu0
    %v1117 = vmul.f32 %v1039, %v1114
    %v1118 = vadd.f32 %v889, %v1117
    %v1119 = vtanh.pop %v1118
    %v1120 = vsub.f32 %v881, %v1119
    %v1121 = vmul.f32 %v1046, %v1120
    %v1122 = vadd.f32 %v1119, %v1121
    %s1123 = scalar_lea.vmem [#allocation12], 16
    %1124 = vst.msk [vmem:[%s1123] sm:$0xff] %vm179, %v1122
    %s1125 = scalar_lea.vmem [#allocation3], 24
    %v1126 = vld [vmem:[%s1125] sm:$0xff]
    %s1127 = scalar_lea.vmem [#allocation4], 24
    %v1128 = vld [vmem:[%s1127] sm:$0xff]
    %s1129 = scalar_lea.vmem [#allocation5], 24
    %v1130 = vld [vmem:[%s1129] sm:$0xff]
    %v1132 = vsel %vm179, %v1122, 0
    %1134 = vmatprep.subr.mxu0 0.0
    %1135 = vmatpush1.msra.mxu0 0.0
    %1136 = vmatprep.subr.mxu0 0.0
    %1137 = vmatpush1.msra.mxu0 0.0
    %1138 = vmatprep.subr.mxu0 0.0
    %1139 = vmatpush1.msra.mxu0 0.0
    %1140 = vmatprep.subr.mxu0 0.0
    %1141 = vmatpush1.msra.mxu0 0.0
    %1142 = vmatprep.subr.mxu0 0.0
    %1143 = vmatpush1.msra.mxu0 0.0
    %1144 = vmatprep.subr.mxu0 0.0
    %1145 = vmatpush1.msra.mxu0 0.0
    %1146 = vmatprep.subr.mxu0 0.0
    %1147 = vmatpush1.msra.mxu0 0.0
    %1148 = vmatprep.subr.mxu0 0.0
    %1149 = vmatpush1.msra.mxu0 0.0
    %1150 = vmatprep.subr.mxu0 0.0
    %1151 = vmatpush1.msra.mxu0 0.0
    %1152 = vmatprep.subr.mxu0 0.0
    %1153 = vmatpush1.msra.mxu0 0.0
    %1154 = vmatprep.subr.mxu0 0.0
    %1155 = vmatpush1.msra.mxu0 0.0
    %1156 = vmatprep.subr.mxu0 0.0
    %1157 = vmatpush1.msra.mxu0 0.0
    %1158 = vmatprep.subr.mxu0 0.0
    %1159 = vmatpush1.msra.mxu0 %v387
    %1160 = vmatprep.subr.mxu0 0.0
    %1161 = vmatpush1.msra.mxu0 %v386
    %1162 = vmatprep.subr.mxu0 0.0
    %1163 = vmatpush1.msra.mxu0 %v385
    %1164 = vmatprep.subr.mxu0 0.0
    %1165 = vmatpush1.msra.mxu0 %v384
    %1166 = vmatprep.subr.mxu0 0.0
    %1167 = vmatpush2.msra.mxu0 0.0
    %1168 = vmatprep.subr.mxu0 0.0
    %1169 = vmatpush2.msra.mxu0 0.0
    %1170 = vmatprep.subr.mxu0 0.0
    %1171 = vmatpush2.msra.mxu0 0.0
    %1172 = vmatprep.subr.mxu0 0.0
    %1173 = vmatpush2.msra.mxu0 0.0
    %1174 = vmatprep.subr.mxu0 0.0
    %1175 = vmatpush2.msra.mxu0 0.0
    %1176 = vmatprep.subr.mxu0 0.0
    %1177 = vmatpush2.msra.mxu0 0.0
    %1178 = vmatprep.subr.mxu0 0.0
    %1179 = vmatpush2.msra.mxu0 0.0
    %1180 = vmatprep.subr.mxu0 0.0
    %1181 = vmatpush2.msra.mxu0 0.0
    %1182 = vmatprep.subr.mxu0 0.0
    %1183 = vmatpush2.msra.mxu0 0.0
    %1184 = vmatprep.subr.mxu0 0.0
    %1185 = vmatpush2.msra.mxu0 0.0
    %1186 = vmatprep.subr.mxu0 0.0
    %1187 = vmatpush2.msra.mxu0 0.0
    %1188 = vmatprep.subr.mxu0 0.0
    %1189 = vmatpush2.msra.mxu0 0.0
    %1190 = vmatprep.subr.mxu0 0.0
    %1191 = vmatpush2.msra.mxu0 0.0
    %1192 = vmatprep.subr.mxu0 0.0
    %1193 = vmatpush2.msra.mxu0 0.0
    %1194 = vmatprep.subr.mxu0 0.0
    %1195 = vmatpush2.msra.mxu0 0.0
    %1196 = vmatprep.subr.mxu0 0.0
    %1197 = vmatpush2.msra.mxu0 0.0
    %1198 = vmatprep.mubr.f32.mxu0 0.0
    %1199 = vmatmul.mubr.f32.gmra.mxu0 %v1132
    %v1200 = vpop.f32.mrf.mxu0
    %v1201 = vadd.f32 0.0, %v1200
    %v1202 = vpop.f32.mrf.mxu0
    %1203 = vdwg.mxu0
    %1204 = vmatprep.subr.mxu0 0.0
    %1205 = vmatpush1.msra.mxu0 0.0
    %1206 = vmatprep.subr.mxu0 0.0
    %1207 = vmatpush1.msra.mxu0 0.0
    %1208 = vmatprep.subr.mxu0 0.0
    %1209 = vmatpush1.msra.mxu0 0.0
    %1210 = vmatprep.subr.mxu0 0.0
    %1211 = vmatpush1.msra.mxu0 0.0
    %1212 = vmatprep.subr.mxu0 0.0
    %1213 = vmatpush1.msra.mxu0 0.0
    %1214 = vmatprep.subr.mxu0 0.0
    %1215 = vmatpush1.msra.mxu0 0.0
    %1216 = vmatprep.subr.mxu0 0.0
    %1217 = vmatpush1.msra.mxu0 0.0
    %1218 = vmatprep.subr.mxu0 0.0
    %1219 = vmatpush1.msra.mxu0 0.0
    %1220 = vmatprep.subr.mxu0 0.0
    %1221 = vmatpush1.msra.mxu0 0.0
    %1222 = vmatprep.subr.mxu0 0.0
    %1223 = vmatpush1.msra.mxu0 0.0
    %1224 = vmatprep.subr.mxu0 0.0
    %1225 = vmatpush1.msra.mxu0 0.0
    %1226 = vmatprep.subr.mxu0 0.0
    %1227 = vmatpush1.msra.mxu0 0.0
    %1228 = vmatprep.subr.mxu0 0.0
    %1229 = vmatpush1.msra.mxu0 %v392
    %1230 = vmatprep.subr.mxu0 0.0
    %1231 = vmatpush1.msra.mxu0 %v391
    %1232 = vmatprep.subr.mxu0 0.0
    %1233 = vmatpush1.msra.mxu0 %v390
    %1234 = vmatprep.subr.mxu0 0.0
    %1235 = vmatpush1.msra.mxu0 %v389
    %1236 = vmatprep.subr.mxu0 0.0
    %1237 = vmatpush2.msra.mxu0 0.0
    %1238 = vmatprep.subr.mxu0 0.0
    %1239 = vmatpush2.msra.mxu0 0.0
    %1240 = vmatprep.subr.mxu0 0.0
    %1241 = vmatpush2.msra.mxu0 0.0
    %1242 = vmatprep.subr.mxu0 0.0
    %1243 = vmatpush2.msra.mxu0 0.0
    %1244 = vmatprep.subr.mxu0 0.0
    %1245 = vmatpush2.msra.mxu0 0.0
    %1246 = vmatprep.subr.mxu0 0.0
    %1247 = vmatpush2.msra.mxu0 0.0
    %1248 = vmatprep.subr.mxu0 0.0
    %1249 = vmatpush2.msra.mxu0 0.0
    %1250 = vmatprep.subr.mxu0 0.0
    %1251 = vmatpush2.msra.mxu0 0.0
    %1252 = vmatprep.subr.mxu0 0.0
    %1253 = vmatpush2.msra.mxu0 0.0
    %1254 = vmatprep.subr.mxu0 0.0
    %1255 = vmatpush2.msra.mxu0 0.0
    %1256 = vmatprep.subr.mxu0 0.0
    %1257 = vmatpush2.msra.mxu0 0.0
    %1258 = vmatprep.subr.mxu0 0.0
    %1259 = vmatpush2.msra.mxu0 0.0
    %1260 = vmatprep.subr.mxu0 0.0
    %1261 = vmatpush2.msra.mxu0 0.0
    %1262 = vmatprep.subr.mxu0 0.0
    %1263 = vmatpush2.msra.mxu0 0.0
    %1264 = vmatprep.subr.mxu0 0.0
    %1265 = vmatpush2.msra.mxu0 0.0
    %1266 = vmatprep.subr.mxu0 0.0
    %1267 = vmatpush2.msra.mxu0 0.0
    %1268 = vmatprep.mubr.f32.mxu0 0.0
    %1269 = vmatmul.mubr.f32.gmra.mxu0 %v1132
    %v1270 = vpop.f32.mrf.mxu0
    %v1271 = vadd.f32 0.0, %v1270
    %v1272 = vpop.f32.mrf.mxu0
    %1273 = vdwg.mxu0
    %v1274 = vadd.f32 %v1126, %v1201
    %v1275 = vxor.u32 %v1274, 2147483648
    %v1276 = vmul.f32 %v1275, 1.442695
    %v1277 = vpow.pop %v1276
    %v1278 = vadd.f32 %v1277, 1.0
    %v1279 = vrcp.pop %v1278
    %v1280 = vmul.f32 1.0, %v1279
    %v1281 = vadd.f32 %v1128, %v1271
    %v1282 = vxor.u32 %v1281, 2147483648
    %v1283 = vmul.f32 %v1282, 1.442695
    %v1284 = vpow.pop %v1283
    %v1285 = vadd.f32 %v1284, 1.0
    %v1286 = vrcp.pop %v1285
    %v1287 = vmul.f32 1.0, %v1286
    %1288 = vmatprep.subr.mxu0 0.0
    %1289 = vmatpush1.msra.mxu0 0.0
    %1290 = vmatprep.subr.mxu0 0.0
    %1291 = vmatpush1.msra.mxu0 0.0
    %1292 = vmatprep.subr.mxu0 0.0
    %1293 = vmatpush1.msra.mxu0 0.0
    %1294 = vmatprep.subr.mxu0 0.0
    %1295 = vmatpush1.msra.mxu0 0.0
    %1296 = vmatprep.subr.mxu0 0.0
    %1297 = vmatpush1.msra.mxu0 0.0
    %1298 = vmatprep.subr.mxu0 0.0
    %1299 = vmatpush1.msra.mxu0 0.0
    %1300 = vmatprep.subr.mxu0 0.0
    %1301 = vmatpush1.msra.mxu0 0.0
    %1302 = vmatprep.subr.mxu0 0.0
    %1303 = vmatpush1.msra.mxu0 0.0
    %1304 = vmatprep.subr.mxu0 0.0
    %1305 = vmatpush1.msra.mxu0 0.0
    %1306 = vmatprep.subr.mxu0 0.0
    %1307 = vmatpush1.msra.mxu0 0.0
    %1308 = vmatprep.subr.mxu0 0.0
    %1309 = vmatpush1.msra.mxu0 0.0
    %1310 = vmatprep.subr.mxu0 0.0
    %1311 = vmatpush1.msra.mxu0 0.0
    %1312 = vmatprep.subr.mxu0 0.0
    %1313 = vmatpush1.msra.mxu0 %v397
    %1314 = vmatprep.subr.mxu0 0.0
    %1315 = vmatpush1.msra.mxu0 %v396
    %1316 = vmatprep.subr.mxu0 0.0
    %1317 = vmatpush1.msra.mxu0 %v395
    %1318 = vmatprep.subr.mxu0 0.0
    %1319 = vmatpush1.msra.mxu0 %v394
    %1320 = vmatprep.subr.mxu0 0.0
    %1321 = vmatpush2.msra.mxu0 0.0
    %1322 = vmatprep.subr.mxu0 0.0
    %1323 = vmatpush2.msra.mxu0 0.0
    %1324 = vmatprep.subr.mxu0 0.0
    %1325 = vmatpush2.msra.mxu0 0.0
    %1326 = vmatprep.subr.mxu0 0.0
    %1327 = vmatpush2.msra.mxu0 0.0
    %1328 = vmatprep.subr.mxu0 0.0
    %1329 = vmatpush2.msra.mxu0 0.0
    %1330 = vmatprep.subr.mxu0 0.0
    %1331 = vmatpush2.msra.mxu0 0.0
    %1332 = vmatprep.subr.mxu0 0.0
    %1333 = vmatpush2.msra.mxu0 0.0
    %1334 = vmatprep.subr.mxu0 0.0
    %1335 = vmatpush2.msra.mxu0 0.0
    %1336 = vmatprep.subr.mxu0 0.0
    %1337 = vmatpush2.msra.mxu0 0.0
    %1338 = vmatprep.subr.mxu0 0.0
    %1339 = vmatpush2.msra.mxu0 0.0
    %1340 = vmatprep.subr.mxu0 0.0
    %1341 = vmatpush2.msra.mxu0 0.0
    %1342 = vmatprep.subr.mxu0 0.0
    %1343 = vmatpush2.msra.mxu0 0.0
    %1344 = vmatprep.subr.mxu0 0.0
    %1345 = vmatpush2.msra.mxu0 0.0
    %1346 = vmatprep.subr.mxu0 0.0
    %1347 = vmatpush2.msra.mxu0 0.0
    %1348 = vmatprep.subr.mxu0 0.0
    %1349 = vmatpush2.msra.mxu0 0.0
    %1350 = vmatprep.subr.mxu0 0.0
    %1351 = vmatpush2.msra.mxu0 0.0
    %1352 = vmatprep.mubr.f32.mxu0 0.0
    %1353 = vmatmul.mubr.f32.gmra.mxu0 %v1132
    %v1354 = vpop.f32.mrf.mxu0
    %v1355 = vadd.f32 %v403, %v1354
    %v1356 = vpop.f32.mrf.mxu0
    %1357 = vdwg.mxu0
    %v1358 = vmul.f32 %v1280, %v1355
    %v1359 = vadd.f32 %v1130, %v1358
    %v1360 = vtanh.pop %v1359
    %v1361 = vsub.f32 %v1122, %v1360
    %v1362 = vmul.f32 %v1287, %v1361
    %v1363 = vadd.f32 %v1360, %v1362
    %s1364 = scalar_lea.vmem [#allocation12], 24
    %1365 = vst.msk [vmem:[%s1364] sm:$0xff] %vm179, %v1363
    %1366 = vst.msk [vmem:[#allocation2] sm:$0xff] %vm179, %v1363
    // Predicated region
    $region38: #{tpu_custom_call.1} parent=1 // pred_check
      _
    $region39: #{tpu_custom_call.1} parent=1 // pred_check_branch
      %1368 = sbr.rel (0) target = $region41
    $region40: #{tpu_custom_call.1} parent=1 // pred_region
      %s1370 = ssub.s32 512, 512
      %1371 = vsyncadd [#allocation8], %s1370
      %s1372 = sshll.u32 [#allocation12], 4
      %s1373 = int_to_ptr.vmem [resolvable:$true] %s1372
      %1378 = dma.vmem_to_hbm [thread:$0]  %s1373, 512, %s5, [#allocation8], 128, 128, 8
    $region41: #{tpu_custom_call.1} parent=1 // pred_fallthru
      _
    // Predicated region
    $region42: #{tpu_custom_call.1} parent=1 // pred_check
      _
    $region43: #{tpu_custom_call.1} parent=1 // pred_check_branch
      %1380 = sbr.rel (0) target = $region45
    $region44: #{tpu_custom_call.1} parent=1 // pred_region
      %1381 = dma.done [#allocation8], 512
    $region45: #{tpu_custom_call.1} parent=1 // pred_fallthru
      _
    %1382 = vsyncpa [#allocation7], 1
    %1383 = vsyncpa [#allocation10], 1
    %1384 = vsyncpa [#allocation8], 1

</llo_original>
